<compile_context>
chip_gen: v7x
topology: tpu7x:2x2x1
jax: 0.10.0
libtpu: 0.0.40
codegen_flags: <defaults>
</compile_context>

<pallas_src>
import math
from functools import partial

import jax
import jax.numpy as jnp
from jax import lax
from jax.experimental import pallas as pl
from jax.experimental.pallas import tpu as pltpu

# contract dim 0 of both operands: A^T @ B without materializing A^T
_TN = (((0,), (0,)), ((), ()))


def _mha_conv_kernel(x_ref, wq_ref, wskv_ref, hpool_ref, we_ref, hexp_aug_ref,
                     hexp_ref, src_ref, dst_ref, ea_ref,
                     out_ref,
                     q_scr, skv_scr, m_scr, nl_scr,
                     *, n_nodes_pad, n_heads_pad, hc):
    i = pl.program_id(0)
    HP = n_heads_pad
    HC = hc
    w_src = skv_scr.shape[1]           # HC (k) + HP (ones) + HC (v)

    # ---- one-time init: node projections + accumulator reset ---------------
    @pl.when(i == 0)
    def _init():
        x = x_ref[...]                                                    # (Np, dim)
        q_scr[...] = jnp.dot(x, wq_ref[...], preferred_element_type=jnp.float32)
        # combined [k | ones | v]: ones block injected via a broadcast row so the
        # whole scratch is written with one full-width store.
        col = lax.broadcasted_iota(jnp.int32, (1, w_src), 1)
        ones_row = ((col >= HC) & (col < HC + HP)).astype(jnp.float32)
        skv_scr[...] = (jnp.dot(x, wskv_ref[...], preferred_element_type=jnp.float32)
                        + ones_row)
        m_scr[...] = jnp.full(m_scr.shape, -jnp.inf, dtype=m_scr.dtype)
        nl_scr[...] = jnp.zeros(nl_scr.shape, nl_scr.dtype)

    # ---- per edge-tile work -------------------------------------------------
    src = src_ref[...]                                                    # (TE, 1) i32
    dst = dst_ref[...]                                                    # (TE, 1) i32
    te = src.shape[0]
    node_iota = lax.broadcasted_iota(jnp.int32, (te, n_nodes_pad), 1)
    oh_src = (src == node_iota).astype(jnp.float32)                       # (TE, Np)
    oh_dst = (dst == node_iota).astype(jnp.float32)                       # (TE, Np)

    # gathers from resident node projections (MXU): one pass for q, one fused
    # pass for [k | ones | v].
    q_e = jnp.dot(oh_dst, q_scr[...], preferred_element_type=jnp.float32)  # (TE, HC)
    g = jnp.dot(oh_src, skv_scr[...], preferred_element_type=jnp.float32)  # (TE, w_src)
    k_e = g[:, :HC]                                                        # (TE, HC)
    ov_e = g[:, HC:]                                                       # (TE, HP+HC) = [1s | v]

    # per-head scaled dot product + edge bias; hpool already carries 1/sqrt(C)
    scores = (jnp.dot(q_e * k_e, hpool_ref[...], preferred_element_type=jnp.float32)
              + jnp.dot(ea_ref[...], we_ref[...], preferred_element_type=jnp.float32))  # (TE, HP)

    # ---- online segment softmax with a GLOBAL per-head running max ---------
    m_prev = m_scr[...]                                                    # (1, HP)
    m_new = jnp.maximum(m_prev, jnp.max(scores, axis=0, keepdims=True))    # (1, HP)
    corr = jnp.exp(m_prev - m_new)                                         # (1, HP)
    exp_s = jnp.exp(scores - m_new)                                        # (TE, HP)

    # hexp_aug = [I_HP | head-expand]  ->  [exp_s | exp per head_dim column]
    hexp_aug = hexp_aug_ref[...]                                           # (HP, HP+HC)
    corr_full = jnp.dot(corr, hexp_aug, preferred_element_type=jnp.float32)   # (1, HP+HC)
    exp_full = jnp.dot(exp_s, hexp_aug, preferred_element_type=jnp.float32)   # (TE, HP+HC)

    # single fused scatter-add to destination nodes:
    #   cols [:HP]  -> softmax denominator  (exp_s * gathered ones)
    #   cols [HP:]  -> numerator            (exp expanded * gathered v)
    nl_scr[...] = nl_scr[...] * corr_full + lax.dot_general(
        oh_dst, exp_full * ov_e, _TN, preferred_element_type=jnp.float32)  # (Np, HP+HC)
    m_scr[...] = m_new

    # ---- finalize: normalize once per destination node ----------------------
    @pl.when(i == pl.num_programs(0) - 1)
    def _finalize():
        l = nl_scr[:, :HP]                                                 # (Np, HP)
        num = nl_scr[:, HP:]                                               # (Np, HC)
        denom = jnp.dot(l, hexp_ref[...], preferred_element_type=jnp.float32)  # (Np, HC)
        out_ref[...] = (num / (denom + 1e-16)).astype(out_ref.dtype)


def _round_up(v, m):
    return ((v + m - 1) // m) * m


def multi_head_attention_conv(x, edge_index, edge_attr, params, *,
                              n_heads, head_dim, edge_tile=256):
    """Forward of MultiHeadAttentionConv (single-tensor x, dropout=0, no attn return)."""
    N, dim = x.shape
    E = edge_index.shape[1]
    ED = edge_attr.shape[1]
    H, C = n_heads, head_dim
    HC = H * C
    HP = max(8, _round_up(H, 8))          # padded head count (sublane/lane friendliness)
    W_SRC = 2 * HC + HP                   # [k | ones | v]

    te = _round_up(max(8, min(edge_tile, _round_up(E, 8))), 8)
    n_pad = _round_up(N, 8)
    e_pad = _round_up(E, te)
    num_tiles = e_pad // te

    f32 = jnp.float32
    x_p = jnp.pad(x.astype(f32), ((0, n_pad - N), (0, 0)))
    ea_p = jnp.pad(edge_attr.astype(f32), ((0, e_pad - E), (0, 0)))
    # padded edges use node index n_pad (matches nothing -> zero gather/scatter)
    src = jnp.pad(edge_index[0].astype(jnp.int32), (0, e_pad - E),
                  constant_values=n_pad)[:, None]
    dst = jnp.pad(edge_index[1].astype(jnp.int32), (0, e_pad - E),
                  constant_values=n_pad)[:, None]

    # PyTorch Linear weights are (out, in); pass transposed (in, out).
    wq = params["lin_query"].astype(f32).T                                # (dim, HC)
    wk = params["lin_key"].astype(f32).T                                  # (dim, HC)
    wv = params["lin_value"].astype(f32).T                                # (dim, HC)
    wskv = jnp.concatenate([wk, jnp.zeros((dim, HP), f32), wv], axis=1)   # (dim, W_SRC)
    we = jnp.zeros((ED, HP), f32).at[:, :H].set(params["lin_edge"].astype(f32).T)

    head_of_col = jnp.arange(HC) // C                                     # (HC,)
    # head-pool (sum over head_dim) with 1/sqrt(C) folded in, head-padded
    hpool = (head_of_col[:, None] == jnp.arange(HP)[None, :]).astype(f32) / math.sqrt(C)
    # head-expand: broadcast a per-head value over its head_dim columns
    hexp = (jnp.arange(HP)[:, None] == head_of_col[None, :]).astype(f32)  # (HP, HC)
    # identity-augmented expand: [I_HP | hexp] -> produces [exp_s | exp_hc] in one matmul
    hexp_aug = jnp.concatenate([jnp.eye(HP, dtype=f32), hexp], axis=1)    # (HP, HP+HC)

    kernel = partial(_mha_conv_kernel, n_nodes_pad=n_pad, n_heads_pad=HP, hc=HC)

    grid_spec = pltpu.PrefetchScalarGridSpec(
        num_scalar_prefetch=0,
        grid=(num_tiles,),
        in_specs=[
            pl.BlockSpec((n_pad, dim), lambda i: (0, 0)),     # x (resident, fetched once)
            pl.BlockSpec((dim, HC), lambda i: (0, 0)),        # Wq
            pl.BlockSpec((dim, W_SRC), lambda i: (0, 0)),     # [Wk | 0 | Wv]
            pl.BlockSpec((HC, HP), lambda i: (0, 0)),         # head-pool (pre-scaled)
            pl.BlockSpec((ED, HP), lambda i: (0, 0)),         # edge-bias weight (head-padded)
            pl.BlockSpec((HP, HP + HC), lambda i: (0, 0)),    # [I | head-expand]
            pl.BlockSpec((HP, HC), lambda i: (0, 0)),         # head-expand (finalize)
            pl.BlockSpec((te, 1), lambda i: (i, 0)),          # src ids (edge tile)
            pl.BlockSpec((te, 1), lambda i: (i, 0)),          # dst ids (edge tile)
            pl.BlockSpec((te, ED), lambda i: (i, 0)),         # edge_attr (edge tile)
        ],
        out_specs=pl.BlockSpec((n_pad, HC), lambda i: (0, 0)),
        scratch_shapes=[
            pltpu.VMEM((n_pad, HC), f32),        # q per node
            pltpu.VMEM((n_pad, W_SRC), f32),     # [k | ones | v] per node
            pltpu.VMEM((1, HP), f32),            # running global per-head max
            pltpu.VMEM((n_pad, HP + HC), f32),   # [denominator | numerator] per node
        ],
    )

    out = pl.pallas_call(
        kernel,
        out_shape=jax.ShapeDtypeStruct((n_pad, HC), f32),
        grid_spec=grid_spec,
        compiler_params=pltpu.CompilerParams(
            dimension_semantics=("arbitrary",),        # reduction/accumulator axis
            vmem_limit_bytes=64 * 1024 * 1024),
    )(x_p, wq, wskv, hpool, we, hexp_aug, hexp, src, dst, ea_p)
    return out[:N]


def _reference(x, edge_index, edge_attr, params, H, C):
    """Pure-JAX reference mirroring the PyTorch forward (segment softmax)."""
    N = x.shape[0]
    src, dst = edge_index[0], edge_index[1]
    q = (x @ params["lin_query"].T).reshape(N, H, C)
    k = (x @ params["lin_key"].T).reshape(N, H, C)
    v = (x @ params["lin_value"].T).reshape(N, H, C)
    bias = edge_attr @ params["lin_edge"].T                               # (E, H)
    s = (q[dst] * k[src]).sum(-1) / math.sqrt(C) + bias                   # (E, H)
    smax = jax.ops.segment_max(s, dst, num_segments=N)
    e = jnp.exp(s - smax[dst])
    den = jax.ops.segment_sum(e, dst, num_segments=N)
    alpha = e / (den[dst] + 1e-16)
    out = jax.ops.segment_sum(v[src] * alpha[..., None], dst, num_segments=N)
    return out.reshape(N, H * C)


if __name__ == "__main__":
    # small shapes consistent with the module (multi-tile edge grid exercised)
    N_NODES, DIM, HEAD_DIM, N_HEADS, EDGE_DIM, N_EDGES = 16, 32, 8, 2, 8, 64

    key = jax.random.PRNGKey(0)
    ks = jax.random.split(key, 8)

    def linear_weight(k, out_f, in_f):
        bound = 1.0 / math.sqrt(in_f)
        return jax.random.uniform(k, (out_f, in_f), jnp.float32, -bound, bound)

    params = {
        "lin_key":   linear_weight(ks[0], N_HEADS * HEAD_DIM, DIM),
        "lin_query": linear_weight(ks[1], N_HEADS * HEAD_DIM, DIM),
        "lin_value": linear_weight(ks[2], N_HEADS * HEAD_DIM, DIM),
        "lin_edge":  linear_weight(ks[3], N_HEADS, EDGE_DIM),
    }
    x = jax.random.normal(ks[4], (N_NODES, DIM), jnp.float32)
    edge_index = jax.random.randint(ks[5], (2, N_EDGES), 0, N_NODES, dtype=jnp.int32)
    edge_attr = jax.random.normal(ks[6], (N_EDGES, EDGE_DIM), jnp.float32)

    out = multi_head_attention_conv(x, edge_index, edge_attr, params,
                                    n_heads=N_HEADS, head_dim=HEAD_DIM,
                                    edge_tile=32)
    out = jax.block_until_ready(out)

    ref = _reference(x, edge_index, edge_attr, params, N_HEADS, HEAD_DIM)
    assert out.shape == (N_NODES, N_HEADS * HEAD_DIM)
    assert jnp.allclose(out, ref, atol=1e-4, rtol=1e-4), (
        "Pallas kernel does not match reference")
    print("KERNEL_OK")
</pallas_src>

<mosaic_0001>
module attributes {stable_mosaic.version = 11 : i64} {
  func.func @_mha_conv_kernel(%arg0: i32, %arg1: memref<16x32xf32, #tpu.memory_space<vmem>>, %arg2: memref<32x16xf32, #tpu.memory_space<vmem>>, %arg3: memref<32x40xf32, #tpu.memory_space<vmem>>, %arg4: memref<16x8xf32, #tpu.memory_space<vmem>>, %arg5: memref<8x8xf32, #tpu.memory_space<vmem>>, %arg6: memref<8x24xf32, #tpu.memory_space<vmem>>, %arg7: memref<8x16xf32, #tpu.memory_space<vmem>>, %arg8: memref<32x1xi32, #tpu.memory_space<vmem>>, %arg9: memref<32x1xi32, #tpu.memory_space<vmem>>, %arg10: memref<32x8xf32, #tpu.memory_space<vmem>>, %arg11: memref<16x16xf32, #tpu.memory_space<vmem>>, %arg12: memref<16x16xf32, #tpu.memory_space<vmem>>, %arg13: memref<16x40xf32, #tpu.memory_space<vmem>>, %arg14: memref<1x8xf32, #tpu.memory_space<vmem>>, %arg15: memref<16x24xf32, #tpu.memory_space<vmem>>) attributes {dimension_semantics = [#tpu.dimension_semantics<arbitrary>], iteration_bounds = array<i64: 2>, scalar_prefetch = 0 : i64, scratch_operands = 4 : i64, tpu.core_type = #tpu.core_type<tc>, window_params = [{pipeline_mode = #tpu.pipeline_mode<synchronous>, transform_indices = @transform_0, window_bounds = array<i64: 16, 32>}, {pipeline_mode = #tpu.pipeline_mode<synchronous>, transform_indices = @transform_1, window_bounds = array<i64: 32, 16>}, {pipeline_mode = #tpu.pipeline_mode<synchronous>, transform_indices = @transform_2, window_bounds = array<i64: 32, 40>}, {pipeline_mode = #tpu.pipeline_mode<synchronous>, transform_indices = @transform_3, window_bounds = array<i64: 16, 8>}, {pipeline_mode = #tpu.pipeline_mode<synchronous>, transform_indices = @transform_4, window_bounds = array<i64: 8, 8>}, {pipeline_mode = #tpu.pipeline_mode<synchronous>, transform_indices = @transform_5, window_bounds = array<i64: 8, 24>}, {pipeline_mode = #tpu.pipeline_mode<synchronous>, transform_indices = @transform_6, window_bounds = array<i64: 8, 16>}, {transform_indices = @transform_7, window_bounds = array<i64: 32, 1>}, {transform_indices = @transform_8, window_bounds = array<i64: 32, 1>}, {transform_indices = @transform_9, window_bounds = array<i64: 32, 8>}, {pipeline_mode = #tpu.pipeline_mode<synchronous>, transform_indices = @transform_10, window_bounds = array<i64: 16, 16>}]} {
    %c0_i32 = arith.constant 0 : i32
    %0 = arith.cmpi eq, %arg0, %c0_i32 : i32
    %1 = arith.extui %0 : i1 to i32
    %c0_i32_0 = arith.constant 0 : i32
    %2 = arith.cmpi ne, %1, %c0_i32_0 : i32
    scf.if %2 {
      %c0_32 = arith.constant 0 : index
      %c0_33 = arith.constant 0 : index
      %50 = vector.load %arg1[%c0_32, %c0_33] : memref<16x32xf32, #tpu.memory_space<vmem>>, vector<16x32xf32>
      %c0_34 = arith.constant 0 : index
      %c0_35 = arith.constant 0 : index
      %51 = vector.load %arg2[%c0_34, %c0_35] : memref<32x16xf32, #tpu.memory_space<vmem>>, vector<32x16xf32>
      %cst_36 = arith.constant dense<0.000000e+00> : vector<16x16xf32>
      %52 = tpu.matmul %50, %51, %cst_36 {dimension_numbers = #tpu.dot_dimension_numbers<[1], [0], [0], [1], [0, 0, 1, 1], [], []>} : vector<16x32xf32>, vector<32x16xf32>, vector<16x16xf32> -> vector<16x16xf32>
      %c0_37 = arith.constant 0 : index
      %c0_38 = arith.constant 0 : index
      %53 = vector.load %arg12[%c0_37, %c0_38] : memref<16x16xf32, #tpu.memory_space<vmem>>, vector<16x16xf32>
      tpu.vector_store %arg12[%c0_37, %c0_38], %52 {strides = array<i32>} : memref<16x16xf32, #tpu.memory_space<vmem>>, vector<16x16xf32>,
      %54 = tpu.iota {dimensions = array<i32: 1>} : vector<1x40xi32>
      %c16_i32 = arith.constant 16 : i32
      %55 = vector.broadcast %c16_i32 : i32 to vector<1x40xi32>
      %56 = arith.cmpi sge, %54, %55 : vector<1x40xi32>
      %c24_i32 = arith.constant 24 : i32
      %57 = vector.broadcast %c24_i32 : i32 to vector<1x40xi32>
      %58 = arith.cmpi slt, %54, %57 : vector<1x40xi32>
      %59 = arith.andi %56, %58 : vector<1x40xi1>
      %60 = arith.extui %59 : vector<1x40xi1> to vector<1x40xi32>
      %61 = arith.sitofp %60 : vector<1x40xi32> to vector<1x40xf32>
      %c0_39 = arith.constant 0 : index
      %c0_40 = arith.constant 0 : index
      %62 = vector.load %arg3[%c0_39, %c0_40] : memref<32x40xf32, #tpu.memory_space<vmem>>, vector<32x40xf32>
      %cst_41 = arith.constant dense<0.000000e+00> : vector<16x40xf32>
      %63 = tpu.matmul %50, %62, %cst_41 {dimension_numbers = #tpu.dot_dimension_numbers<[1], [0], [0], [1], [0, 0, 1, 1], [], []>} : vector<16x32xf32>, vector<32x40xf32>, vector<16x40xf32> -> vector<16x40xf32>
      %64 = vector.broadcast %61 : vector<1x40xf32> to vector<16x40xf32>
      %65 = arith.addf %63, %64 : vector<16x40xf32>
      %c0_42 = arith.constant 0 : index
      %c0_43 = arith.constant 0 : index
      %66 = vector.load %arg13[%c0_42, %c0_43] : memref<16x40xf32, #tpu.memory_space<vmem>>, vector<16x40xf32>
      tpu.vector_store %arg13[%c0_42, %c0_43], %65 {strides = array<i32>} : memref<16x40xf32, #tpu.memory_space<vmem>>, vector<16x40xf32>,
      %cst_44 = arith.constant 0xFF800000 : f32
      %67 = vector.broadcast %cst_44 : f32 to vector<1x8xf32>
      %c0_45 = arith.constant 0 : index
      %c0_46 = arith.constant 0 : index
      %68 = vector.load %arg14[%c0_45, %c0_46] : memref<1x8xf32, #tpu.memory_space<vmem>>, vector<1x8xf32>
      tpu.vector_store %arg14[%c0_45, %c0_46], %67 {strides = array<i32>} : memref<1x8xf32, #tpu.memory_space<vmem>>, vector<1x8xf32>,
      %cst_47 = arith.constant 0.000000e+00 : f32
      %69 = vector.broadcast %cst_47 : f32 to vector<16x24xf32>
      %c0_48 = arith.constant 0 : index
      %c0_49 = arith.constant 0 : index
      %70 = vector.load %arg15[%c0_48, %c0_49] : memref<16x24xf32, #tpu.memory_space<vmem>>, vector<16x24xf32>
      tpu.vector_store %arg15[%c0_48, %c0_49], %69 {strides = array<i32>} : memref<16x24xf32, #tpu.memory_space<vmem>>, vector<16x24xf32>,
    } else {
    }
    %c0 = arith.constant 0 : index
    %c0_1 = arith.constant 0 : index
    %3 = vector.load %arg8[%c0, %c0_1] : memref<32x1xi32, #tpu.memory_space<vmem>>, vector<32x1xi32>
    %c0_2 = arith.constant 0 : index
    %c0_3 = arith.constant 0 : index
    %4 = vector.load %arg9[%c0_2, %c0_3] : memref<32x1xi32, #tpu.memory_space<vmem>>, vector<32x1xi32>
    %5 = tpu.iota {dimensions = array<i32: 1>} : vector<32x16xi32>
    %6 = vector.broadcast %3 : vector<32x1xi32> to vector<32x16xi32>
    %7 = arith.cmpi eq, %6, %5 : vector<32x16xi32>
    %8 = arith.extui %7 : vector<32x16xi1> to vector<32x16xi32>
    %9 = arith.sitofp %8 : vector<32x16xi32> to vector<32x16xf32>
    %10 = vector.broadcast %4 : vector<32x1xi32> to vector<32x16xi32>
    %11 = arith.cmpi eq, %10, %5 : vector<32x16xi32>
    %12 = arith.extui %11 : vector<32x16xi1> to vector<32x16xi32>
    %13 = arith.sitofp %12 : vector<32x16xi32> to vector<32x16xf32>
    %c0_4 = arith.constant 0 : index
    %c0_5 = arith.constant 0 : index
    %14 = vector.load %arg12[%c0_4, %c0_5] : memref<16x16xf32, #tpu.memory_space<vmem>>, vector<16x16xf32>
    %cst = arith.constant dense<0.000000e+00> : vector<32x16xf32>
    %15 = tpu.matmul %13, %14, %cst {dimension_numbers = #tpu.dot_dimension_numbers<[1], [0], [0], [1], [0, 0, 1, 1], [], []>} : vector<32x16xf32>, vector<16x16xf32>, vector<32x16xf32> -> vector<32x16xf32>
    %c0_6 = arith.constant 0 : index
    %c0_7 = arith.constant 0 : index
    %16 = vector.load %arg13[%c0_6, %c0_7] : memref<16x40xf32, #tpu.memory_space<vmem>>, vector<16x40xf32>
    %cst_8 = arith.constant dense<0.000000e+00> : vector<32x40xf32>
    %17 = tpu.matmul %9, %16, %cst_8 {dimension_numbers = #tpu.dot_dimension_numbers<[1], [0], [0], [1], [0, 0, 1, 1], [], []>} : vector<32x16xf32>, vector<16x40xf32>, vector<32x40xf32> -> vector<32x40xf32>
    %18 = vector.extract_strided_slice %17 {offsets = [0, 0], sizes = [32, 16], strides = [1, 1]} : vector<32x40xf32> to vector<32x16xf32>
    %19 = vector.extract_strided_slice %17 {offsets = [0, 16], sizes = [32, 24], strides = [1, 1]} : vector<32x40xf32> to vector<32x24xf32>
    %20 = arith.mulf %15, %18 : vector<32x16xf32>
    %c0_9 = arith.constant 0 : index
    %c0_10 = arith.constant 0 : index
    %21 = vector.load %arg4[%c0_9, %c0_10] : memref<16x8xf32, #tpu.memory_space<vmem>>, vector<16x8xf32>
    %cst_11 = arith.constant dense<0.000000e+00> : vector<32x8xf32>
    %22 = tpu.matmul %20, %21, %cst_11 {dimension_numbers = #tpu.dot_dimension_numbers<[1], [0], [0], [1], [0, 0, 1, 1], [], []>} : vector<32x16xf32>, vector<16x8xf32>, vector<32x8xf32> -> vector<32x8xf32>
    %c0_12 = arith.constant 0 : index
    %c0_13 = arith.constant 0 : index
    %23 = vector.load %arg10[%c0_12, %c0_13] : memref<32x8xf32, #tpu.memory_space<vmem>>, vector<32x8xf32>
    %c0_14 = arith.constant 0 : index
    %c0_15 = arith.constant 0 : index
    %24 = vector.load %arg5[%c0_14, %c0_15] : memref<8x8xf32, #tpu.memory_space<vmem>>, vector<8x8xf32>
    %cst_16 = arith.constant dense<0.000000e+00> : vector<32x8xf32>
    %25 = tpu.matmul %23, %24, %cst_16 {dimension_numbers = #tpu.dot_dimension_numbers<[1], [0], [0], [1], [0, 0, 1, 1], [], []>} : vector<32x8xf32>, vector<8x8xf32>, vector<32x8xf32> -> vector<32x8xf32>
    %26 = arith.addf %22, %25 : vector<32x8xf32>
    %c0_17 = arith.constant 0 : index
    %c0_18 = arith.constant 0 : index
    %27 = vector.load %arg14[%c0_17, %c0_18] : memref<1x8xf32, #tpu.memory_space<vmem>>, vector<1x8xf32>
    %cst_19 = arith.constant dense<0xFF800000> : vector<8xf32>
    %28 = vector.multi_reduction <maximumf>, %26, %cst_19 [0] : vector<32x8xf32> to vector<8xf32>
    %29 = vector.shape_cast %28 : vector<8xf32> to vector<1x8xf32>
    %30 = arith.maximumf %27, %29 : vector<1x8xf32>
    %31 = arith.subf %27, %30 : vector<1x8xf32>
    %32 = math.exp %31 : vector<1x8xf32>
    %33 = vector.broadcast %30 : vector<1x8xf32> to vector<32x8xf32>
    %34 = arith.subf %26, %33 : vector<32x8xf32>
    %35 = math.exp %34 : vector<32x8xf32>
    %c0_20 = arith.constant 0 : index
    %c0_21 = arith.constant 0 : index
    %36 = vector.load %arg6[%c0_20, %c0_21] : memref<8x24xf32, #tpu.memory_space<vmem>>, vector<8x24xf32>
    %cst_22 = arith.constant dense<0.000000e+00> : vector<1x24xf32>
    %37 = tpu.matmul %32, %36, %cst_22 {dimension_numbers = #tpu.dot_dimension_numbers<[1], [0], [0], [1], [0, 0, 1, 1], [], []>} : vector<1x8xf32>, vector<8x24xf32>, vector<1x24xf32> -> vector<1x24xf32>
    %cst_23 = arith.constant dense<0.000000e+00> : vector<32x24xf32>
    %38 = tpu.matmul %35, %36, %cst_23 {dimension_numbers = #tpu.dot_dimension_numbers<[1], [0], [0], [1], [0, 0, 1, 1], [], []>} : vector<32x8xf32>, vector<8x24xf32>, vector<32x24xf32> -> vector<32x24xf32>
    %c0_24 = arith.constant 0 : index
    %c0_25 = arith.constant 0 : index
    %39 = vector.load %arg15[%c0_24, %c0_25] : memref<16x24xf32, #tpu.memory_space<vmem>>, vector<16x24xf32>
    %40 = vector.broadcast %37 : vector<1x24xf32> to vector<16x24xf32>
    %41 = arith.mulf %39, %40 : vector<16x24xf32>
    %42 = arith.mulf %38, %19 : vector<32x24xf32>
    %cst_26 = arith.constant dense<0.000000e+00> : vector<16x24xf32>
    %43 = tpu.matmul %13, %42, %cst_26 {dimension_numbers = #tpu.dot_dimension_numbers<[0], [0], [1], [1], [0, 1, 1, 1], [], []>} : vector<32x16xf32>, vector<32x24xf32>, vector<16x24xf32> -> vector<16x24xf32>
    %44 = arith.addf %41, %43 : vector<16x24xf32>
    %c0_27 = arith.constant 0 : index
    %c0_28 = arith.constant 0 : index
    %45 = vector.load %arg15[%c0_27, %c0_28] : memref<16x24xf32, #tpu.memory_space<vmem>>, vector<16x24xf32>
    tpu.vector_store %arg15[%c0_27, %c0_28], %44 {strides = array<i32>} : memref<16x24xf32, #tpu.memory_space<vmem>>, vector<16x24xf32>,
    %c0_29 = arith.constant 0 : index
    %c0_30 = arith.constant 0 : index
    %46 = vector.load %arg14[%c0_29, %c0_30] : memref<1x8xf32, #tpu.memory_space<vmem>>, vector<1x8xf32>
    tpu.vector_store %arg14[%c0_29, %c0_30], %30 {strides = array<i32>} : memref<1x8xf32, #tpu.memory_space<vmem>>, vector<1x8xf32>,
    %c1_i32 = arith.constant 1 : i32
    %47 = arith.cmpi eq, %arg0, %c1_i32 : i32
    %48 = arith.extui %47 : i1 to i32
    %c0_i32_31 = arith.constant 0 : i32
    %49 = arith.cmpi ne, %48, %c0_i32_31 : i32
    scf.if %49 {
      %c0_32 = arith.constant 0 : index
      %c0_33 = arith.constant 0 : index
      %50 = vector.load %arg15[%c0_32, %c0_33] : memref<16x24xf32, #tpu.memory_space<vmem>>, vector<16x8xf32>
      %c0_34 = arith.constant 0 : index
      %c8 = arith.constant 8 : index
      %51 = vector.load %arg15[%c0_34, %c8] : memref<16x24xf32, #tpu.memory_space<vmem>>, vector<16x16xf32>
      %c0_35 = arith.constant 0 : index
      %c0_36 = arith.constant 0 : index
      %52 = vector.load %arg7[%c0_35, %c0_36] : memref<8x16xf32, #tpu.memory_space<vmem>>, vector<8x16xf32>
      %cst_37 = arith.constant dense<0.000000e+00> : vector<16x16xf32>
      %53 = tpu.matmul %50, %52, %cst_37 {dimension_numbers = #tpu.dot_dimension_numbers<[1], [0], [0], [1], [0, 0, 1, 1], [], []>} : vector<16x8xf32>, vector<8x16xf32>, vector<16x16xf32> -> vector<16x16xf32>
      %cst_38 = arith.constant 1.000000e-16 : f32
      %54 = vector.broadcast %cst_38 : f32 to vector<16x16xf32>
      %55 = arith.addf %53, %54 : vector<16x16xf32>
      %56 = arith.divf %51, %55 : vector<16x16xf32>
      %c0_39 = arith.constant 0 : index
      %c0_40 = arith.constant 0 : index
      %57 = vector.load %arg11[%c0_39, %c0_40] : memref<16x16xf32, #tpu.memory_space<vmem>>, vector<16x16xf32>
      tpu.vector_store %arg11[%c0_39, %c0_40], %56 {strides = array<i32>} : memref<16x16xf32, #tpu.memory_space<vmem>>, vector<16x16xf32>,
    } else {
    }
    return
  }
  func.func @transform_0(%arg0: i32) -> (i32, i32) {
    %c0_i32 = arith.constant 0 : i32
    %c0_i32_0 = arith.constant 0 : i32
    %c0_i32_1 = arith.constant 0 : i32
    return %c0_i32, %c0_i32_0 : i32, i32
  }
  func.func @transform_1(%arg0: i32) -> (i32, i32) {
    %c0_i32 = arith.constant 0 : i32
    %c0_i32_0 = arith.constant 0 : i32
    %c0_i32_1 = arith.constant 0 : i32
    return %c0_i32, %c0_i32_0 : i32, i32
  }
  func.func @transform_2(%arg0: i32) -> (i32, i32) {
    %c0_i32 = arith.constant 0 : i32
    %c0_i32_0 = arith.constant 0 : i32
    %c0_i32_1 = arith.constant 0 : i32
    return %c0_i32, %c0_i32_0 : i32, i32
  }
  func.func @transform_3(%arg0: i32) -> (i32, i32) {
    %c0_i32 = arith.constant 0 : i32
    %c0_i32_0 = arith.constant 0 : i32
    %c0_i32_1 = arith.constant 0 : i32
    return %c0_i32, %c0_i32_0 : i32, i32
  }
  func.func @transform_4(%arg0: i32) -> (i32, i32) {
    %c0_i32 = arith.constant 0 : i32
    %c0_i32_0 = arith.constant 0 : i32
    %c0_i32_1 = arith.constant 0 : i32
    return %c0_i32, %c0_i32_0 : i32, i32
  }
  func.func @transform_5(%arg0: i32) -> (i32, i32) {
    %c0_i32 = arith.constant 0 : i32
    %c0_i32_0 = arith.constant 0 : i32
    %c0_i32_1 = arith.constant 0 : i32
    return %c0_i32, %c0_i32_0 : i32, i32
  }
  func.func @transform_6(%arg0: i32) -> (i32, i32) {
    %c0_i32 = arith.constant 0 : i32
    %c0_i32_0 = arith.constant 0 : i32
    %c0_i32_1 = arith.constant 0 : i32
    return %c0_i32, %c0_i32_0 : i32, i32
  }
  func.func @transform_7(%arg0: i32) -> (i32, i32) {
    %c0_i32 = arith.constant 0 : i32
    %c0_i32_0 = arith.constant 0 : i32
    return %arg0, %c0_i32 : i32, i32
  }
  func.func @transform_8(%arg0: i32) -> (i32, i32) {
    %c0_i32 = arith.constant 0 : i32
    %c0_i32_0 = arith.constant 0 : i32
    return %arg0, %c0_i32 : i32, i32
  }
  func.func @transform_9(%arg0: i32) -> (i32, i32) {
    %c0_i32 = arith.constant 0 : i32
    %c0_i32_0 = arith.constant 0 : i32
    return %arg0, %c0_i32 : i32, i32
  }
  func.func @transform_10(%arg0: i32) -> (i32, i32) {
    %c0_i32 = arith.constant 0 : i32
    %c0_i32_0 = arith.constant 0 : i32
    %c0_i32_1 = arith.constant 0 : i32
    return %c0_i32, %c0_i32_0 : i32, i32
  }
}

</mosaic_0001>

<llo_original>
// kernel: tpu_custom_call.1
$region0: #{tpu_custom_call.1}
  #allocation0 [shape = 'u32[]', space=smem, size = 0x4, offset = 0x4, fixed_abs, tag = 'smem constant byte address 0x4 - core index']
  #allocation1 [shape = 'u32[144,128]{1,0:T(1,128)}', space=vmem, size = 0x12000, scoped, tag = 'internal scratch']
  #allocation2 [shape = 'f32[16,16]{1,0:T(8,128)}', space=vmem, size = 0x2000, scoped, tag = 'scratch operand']
  #allocation3 [shape = 'f32[16,40]{1,0:T(8,128)}', space=vmem, size = 0x2000, scoped, tag = 'scratch operand']
  #allocation4 [shape = 'f32[1,8]{1,0:T(1,128)}', space=vmem, size = 0x200, scoped, tag = 'scratch operand']
  #allocation5 [shape = 'f32[16,24]{1,0:T(8,128)}', space=vmem, size = 0x2000, scoped, tag = 'scratch operand']
  %s0 = inlined_call_operand.hbm [shape: f32[16,32], index: 0, kind: input, shape index: {}]
  %s1 = inlined_call_operand.hbm [shape: f32[32,16], index: 1, kind: input, shape index: {}]
  %s2 = inlined_call_operand.hbm [shape: f32[32,40], index: 2, kind: input, shape index: {}]
  %s3 = inlined_call_operand.hbm [shape: f32[16,8], index: 3, kind: input, shape index: {}]
  %s4 = inlined_call_operand.hbm [shape: f32[8,8], index: 4, kind: input, shape index: {}]
  %s5 = inlined_call_operand.hbm [shape: f32[8,24], index: 5, kind: input, shape index: {}]
  %s6 = inlined_call_operand.hbm [shape: f32[8,16], index: 6, kind: input, shape index: {}]
  %s7 = inlined_call_operand.hbm [shape: s32[64,1], index: 7, kind: input, shape index: {}]
  %s8 = inlined_call_operand.hbm [shape: s32[64,1], index: 8, kind: input, shape index: {}]
  %s9 = inlined_call_operand.hbm [shape: f32[64,8], index: 9, kind: input, shape index: {}]
  %s10 = inlined_call_operand.hbm [shape: f32[16,16], index: 10, kind: output, shape index: {}]
  %s11 = sld [smem:[#allocation0]]
  $region121: #{tpu_custom_call.1} parent=0
    _
  %s13 = ssub.s32 1, %s11
  %s14 = scalar_select 0, %s13, %s11
  $region1: #{tpu_custom_call.1} parent=0
    #allocation6 [shape = 'u8[8192]{0}', space=vmem, size = 0x2000, scoped, tag = 'input window, operand 0, single buffered']
    #allocation7 [shape = 's32[2]{0}', space=sflag, size = 0x8, scoped, tag = 'scoped memory for tpu_custom_call.1']
    #allocation8 [shape = 's32[2]{0}', space=sflag, size = 0x8, scoped, tag = 'scoped memory for tpu_custom_call.1']
    #allocation9 [shape = 'u8[16384]{0}', space=vmem, size = 0x4000, scoped, tag = 'input window, operand 1, single buffered']
    #allocation10 [shape = 's32[1]{0}', space=sflag, size = 0x4, scoped, tag = 'scoped memory for tpu_custom_call.1']
    #allocation11 [shape = 'u8[16384]{0}', space=vmem, size = 0x4000, scoped, tag = 'input window, operand 2, single buffered']
    #allocation12 [shape = 'u8[8192]{0}', space=vmem, size = 0x2000, scoped, tag = 'input window, operand 3, single buffered']
    #allocation13 [shape = 's32[1]{0}', space=sflag, size = 0x4, scoped, tag = 'scoped memory for tpu_custom_call.1']
    #allocation14 [shape = 'u8[4096]{0}', space=vmem, size = 0x1000, scoped, tag = 'input window, operand 4, single buffered']
    #allocation15 [shape = 'u8[4096]{0}', space=vmem, size = 0x1000, scoped, tag = 'input window, operand 5, single buffered']
    #allocation16 [shape = 's32[1]{0}', space=sflag, size = 0x4, scoped, tag = 'scoped memory for tpu_custom_call.1']
    #allocation17 [shape = 'u8[4096]{0}', space=vmem, size = 0x1000, scoped, tag = 'input window, operand 6, single buffered']
    #allocation18 [shape = 'u8[32768]{0}', space=vmem, size = 0x8000, scoped, tag = 'input window, operand 7']
    #allocation19 [shape = 's32[2]{0}', space=sflag, size = 0x8, scoped, tag = 'scoped memory for tpu_custom_call.1']
    #allocation20 [shape = 'u8[32768]{0}', space=vmem, size = 0x8000, scoped, tag = 'input window, operand 8']
    #allocation21 [shape = 'u8[32768]{0}', space=vmem, size = 0x8000, scoped, tag = 'input window, operand 9']
    #allocation22 [shape = 's32[2]{0}', space=sflag, size = 0x8, scoped, tag = 'scoped memory for tpu_custom_call.1']
    #allocation23 [shape = 'u8[8192]{0}', space=vmem, size = 0x2000, scoped, tag = 'output window, operand 0, single buffered']
    %15 = vsyncpa [#allocation7], 0
    %16 = vsyncpa [#allocation10], 0
    %17 = vsyncpa [#allocation13], 0
    %18 = vsyncpa [#allocation16], 0
    %19 = vsyncpa [#allocation19], 0
    %s20 = scalar_lea.sflag [#allocation19], 1
    %21 = vsyncpa %s20, 0
    %22 = vsyncpa [#allocation22], 0
    %s23 = scalar_lea.sflag [#allocation22], 1
    %24 = vsyncpa %s23, 0
    %25 = vsyncpa [#allocation8], 0
    loop: start=0, step=1, limit=4
    $region2: #{tpu_custom_call.1} parent=1 // loop_pre_header
      _
    $region3: #{tpu_custom_call.1} parent=1 // loop_header
      %s27 = sphi 0, %s31
      %p28 = scmp.ge.s32.totalorder %s27, 4
      %s35 = sphi 0, %s35
      %s37 = sphi 0, %s35
      %s38 = sphi 0, %s37
      %s52 = sphi 0, %s38
      %s56 = sphi 0, %s56
      %s58 = sphi 0, %s56
      %s59 = sphi 0, %s58
      %s73 = sphi 0, %s59
      %s77 = sphi 0, %s77
      %s79 = sphi 0, %s77
      %s80 = sphi 0, %s79
      %s94 = sphi 0, %s80
      %s98 = sphi 0, %s98
      %s100 = sphi 0, %s98
      %s101 = sphi 0, %s100
      %s115 = sphi 0, %s101
      %s119 = sphi 0, %s119
      %s121 = sphi 0, %s119
      %s122 = sphi 0, %s121
      %s136 = sphi 0, %s122
      %s140 = sphi 0, %s140
      %s142 = sphi 0, %s140
      %s143 = sphi 0, %s142
      %s157 = sphi 0, %s143
      %s161 = sphi 0, %s161
      %s163 = sphi 0, %s161
      %s164 = sphi 0, %s163
      %s178 = sphi 0, %s164
      %s184 = sphi 0, %s186
      %s187 = sphi 0, %s184
      %s188 = sphi 0, %s187
      %s204 = sphi 0, %s188
      %s210 = sphi 0, %s212
      %s213 = sphi 0, %s210
      %s214 = sphi 0, %s213
      %s230 = sphi 0, %s214
      %s236 = sphi 0, %s238
      %s239 = sphi 0, %s236
      %s240 = sphi 0, %s239
      %s256 = sphi 0, %s240
      %s260 = sphi 0, %s260
      %s262 = sphi 0, %s260
      %s263 = sphi 0, %s262
      %s277 = sphi 0, %s263
    $region4: #{tpu_custom_call.1} parent=1 // loop_header_branch
      %30 = sbr.rel (%p28) target = $region8
    $region5: #{tpu_custom_call.1} parent=1 // loop_body
      %s32 = ssub.s32 %s27, 1
      %s33 = ssub.s32 %s27, 2
      %s34 = sadd.s32 %s27, 1
      %s36 = sadd.s32 %s35, 1
      %p39 = scmp.eq.s32.totalorder %s27, 1
      %p40 = scmp.ne.s32.totalorder %s35, %s37
      %p41 = scmp.eq.s32.totalorder %s27, 0
      %p42 = por %p40, %p41
      %p43 = scmp.ne.s32.totalorder %s35, %s37
      %p44 = scmp.eq.s32.totalorder %s32, 1
      %p45 = por %p43, %p44
      %p46 = scmp.ne.s32.totalorder %s37, %s38
      %p47 = scmp.eq.s32.totalorder %s32, 0
      %p48 = por %p46, %p47
      %p49 = scmp.ne.s32.totalorder %s37, %s38
      %p50 = scmp.eq.s32.totalorder %s33, 1
      %p51 = por %p49, %p50
      %p53 = scmp.ne.s32.totalorder %s38, %s52
      %p54 = scmp.eq.s32.totalorder %s33, 0
      %p55 = por %p53, %p54
      %s57 = sadd.s32 %s56, 1
      %p60 = scmp.eq.s32.totalorder %s27, 1
      %p61 = scmp.ne.s32.totalorder %s56, %s58
      %p62 = scmp.eq.s32.totalorder %s27, 0
      %p63 = por %p61, %p62
      %p64 = scmp.ne.s32.totalorder %s56, %s58
      %p65 = scmp.eq.s32.totalorder %s32, 1
      %p66 = por %p64, %p65
      %p67 = scmp.ne.s32.totalorder %s58, %s59
      %p68 = scmp.eq.s32.totalorder %s32, 0
      %p69 = por %p67, %p68
      %p70 = scmp.ne.s32.totalorder %s58, %s59
      %p71 = scmp.eq.s32.totalorder %s33, 1
      %p72 = por %p70, %p71
      %p74 = scmp.ne.s32.totalorder %s59, %s73
      %p75 = scmp.eq.s32.totalorder %s33, 0
      %p76 = por %p74, %p75
      %s78 = sadd.s32 %s77, 1
      %p81 = scmp.eq.s32.totalorder %s27, 1
      %p82 = scmp.ne.s32.totalorder %s77, %s79
      %p83 = scmp.eq.s32.totalorder %s27, 0
      %p84 = por %p82, %p83
      %p85 = scmp.ne.s32.totalorder %s77, %s79
      %p86 = scmp.eq.s32.totalorder %s32, 1
      %p87 = por %p85, %p86
      %p88 = scmp.ne.s32.totalorder %s79, %s80
      %p89 = scmp.eq.s32.totalorder %s32, 0
      %p90 = por %p88, %p89
      %p91 = scmp.ne.s32.totalorder %s79, %s80
      %p92 = scmp.eq.s32.totalorder %s33, 1
      %p93 = por %p91, %p92
      %p95 = scmp.ne.s32.totalorder %s80, %s94
      %p96 = scmp.eq.s32.totalorder %s33, 0
      %p97 = por %p95, %p96
      %s99 = sadd.s32 %s98, 1
      %p102 = scmp.eq.s32.totalorder %s27, 1
      %p103 = scmp.ne.s32.totalorder %s98, %s100
      %p104 = scmp.eq.s32.totalorder %s27, 0
      %p105 = por %p103, %p104
      %p106 = scmp.ne.s32.totalorder %s98, %s100
      %p107 = scmp.eq.s32.totalorder %s32, 1
      %p108 = por %p106, %p107
      %p109 = scmp.ne.s32.totalorder %s100, %s101
      %p110 = scmp.eq.s32.totalorder %s32, 0
      %p111 = por %p109, %p110
      %p112 = scmp.ne.s32.totalorder %s100, %s101
      %p113 = scmp.eq.s32.totalorder %s33, 1
      %p114 = por %p112, %p113
      %p116 = scmp.ne.s32.totalorder %s101, %s115
      %p117 = scmp.eq.s32.totalorder %s33, 0
      %p118 = por %p116, %p117
      %s120 = sadd.s32 %s119, 1
      %p123 = scmp.eq.s32.totalorder %s27, 1
      %p124 = scmp.ne.s32.totalorder %s119, %s121
      %p125 = scmp.eq.s32.totalorder %s27, 0
      %p126 = por %p124, %p125
      %p127 = scmp.ne.s32.totalorder %s119, %s121
      %p128 = scmp.eq.s32.totalorder %s32, 1
      %p129 = por %p127, %p128
      %p130 = scmp.ne.s32.totalorder %s121, %s122
      %p131 = scmp.eq.s32.totalorder %s32, 0
      %p132 = por %p130, %p131
      %p133 = scmp.ne.s32.totalorder %s121, %s122
      %p134 = scmp.eq.s32.totalorder %s33, 1
      %p135 = por %p133, %p134
      %p137 = scmp.ne.s32.totalorder %s122, %s136
      %p138 = scmp.eq.s32.totalorder %s33, 0
      %p139 = por %p137, %p138
      %s141 = sadd.s32 %s140, 1
      %p144 = scmp.eq.s32.totalorder %s27, 1
      %p145 = scmp.ne.s32.totalorder %s140, %s142
      %p146 = scmp.eq.s32.totalorder %s27, 0
      %p147 = por %p145, %p146
      %p148 = scmp.ne.s32.totalorder %s140, %s142
      %p149 = scmp.eq.s32.totalorder %s32, 1
      %p150 = por %p148, %p149
      %p151 = scmp.ne.s32.totalorder %s142, %s143
      %p152 = scmp.eq.s32.totalorder %s32, 0
      %p153 = por %p151, %p152
      %p154 = scmp.ne.s32.totalorder %s142, %s143
      %p155 = scmp.eq.s32.totalorder %s33, 1
      %p156 = por %p154, %p155
      %p158 = scmp.ne.s32.totalorder %s143, %s157
      %p159 = scmp.eq.s32.totalorder %s33, 0
      %p160 = por %p158, %p159
      %s162 = sadd.s32 %s161, 1
      %p165 = scmp.eq.s32.totalorder %s27, 1
      %p166 = scmp.ne.s32.totalorder %s161, %s163
      %p167 = scmp.eq.s32.totalorder %s27, 0
      %p168 = por %p166, %p167
      %p169 = scmp.ne.s32.totalorder %s161, %s163
      %p170 = scmp.eq.s32.totalorder %s32, 1
      %p171 = por %p169, %p170
      %p172 = scmp.ne.s32.totalorder %s163, %s164
      %p173 = scmp.eq.s32.totalorder %s32, 0
      %p174 = por %p172, %p173
      %p175 = scmp.ne.s32.totalorder %s163, %s164
      %p176 = scmp.eq.s32.totalorder %s33, 1
      %p177 = por %p175, %p176
      %p179 = scmp.ne.s32.totalorder %s164, %s178
      %p180 = scmp.eq.s32.totalorder %s33, 0
      %p181 = por %p179, %p180
      %s182 = ssub.s32 %s27, %s34
      %p183 = scmp.eq.s32.totalorder %s182, 0
      %s185 = sadd.s32 %s184, 1
      %s186 = scalar_select %p183, %s184, %s185
      %p189 = pneg %p183
      %p190 = scmp.eq.s32.totalorder %s27, 1
      %p191 = por %p189, %p190
      %p192 = scmp.ne.s32.totalorder %s184, %s187
      %p193 = scmp.eq.s32.totalorder %s27, 0
      %p194 = por %p192, %p193
      %p195 = scmp.ne.s32.totalorder %s184, %s187
      %p196 = scmp.eq.s32.totalorder %s32, 1
      %p197 = por %p195, %p196
      %p198 = scmp.ne.s32.totalorder %s187, %s188
      %p199 = scmp.eq.s32.totalorder %s32, 0
      %p200 = por %p198, %p199
      %p201 = scmp.ne.s32.totalorder %s187, %s188
      %p202 = scmp.eq.s32.totalorder %s33, 1
      %p203 = por %p201, %p202
      %p205 = scmp.ne.s32.totalorder %s188, %s204
      %p206 = scmp.eq.s32.totalorder %s33, 0
      %p207 = por %p205, %p206
      %s208 = ssub.s32 %s27, %s34
      %p209 = scmp.eq.s32.totalorder %s208, 0
      %s211 = sadd.s32 %s210, 1
      %s212 = scalar_select %p209, %s210, %s211
      %p215 = pneg %p209
      %p216 = scmp.eq.s32.totalorder %s27, 1
      %p217 = por %p215, %p216
      %p218 = scmp.ne.s32.totalorder %s210, %s213
      %p219 = scmp.eq.s32.totalorder %s27, 0
      %p220 = por %p218, %p219
      %p221 = scmp.ne.s32.totalorder %s210, %s213
      %p222 = scmp.eq.s32.totalorder %s32, 1
      %p223 = por %p221, %p222
      %p224 = scmp.ne.s32.totalorder %s213, %s214
      %p225 = scmp.eq.s32.totalorder %s32, 0
      %p226 = por %p224, %p225
      %p227 = scmp.ne.s32.totalorder %s213, %s214
      %p228 = scmp.eq.s32.totalorder %s33, 1
      %p229 = por %p227, %p228
      %p231 = scmp.ne.s32.totalorder %s214, %s230
      %p232 = scmp.eq.s32.totalorder %s33, 0
      %p233 = por %p231, %p232
      %s234 = ssub.s32 %s27, %s34
      %p235 = scmp.eq.s32.totalorder %s234, 0
      %s237 = sadd.s32 %s236, 1
      %s238 = scalar_select %p235, %s236, %s237
      %p241 = pneg %p235
      %p242 = scmp.eq.s32.totalorder %s27, 1
      %p243 = por %p241, %p242
      %p244 = scmp.ne.s32.totalorder %s236, %s239
      %p245 = scmp.eq.s32.totalorder %s27, 0
      %p246 = por %p244, %p245
      %p247 = scmp.ne.s32.totalorder %s236, %s239
      %p248 = scmp.eq.s32.totalorder %s32, 1
      %p249 = por %p247, %p248
      %p250 = scmp.ne.s32.totalorder %s239, %s240
      %p251 = scmp.eq.s32.totalorder %s32, 0
      %p252 = por %p250, %p251
      %p253 = scmp.ne.s32.totalorder %s239, %s240
      %p254 = scmp.eq.s32.totalorder %s33, 1
      %p255 = por %p253, %p254
      %p257 = scmp.ne.s32.totalorder %s240, %s256
      %p258 = scmp.eq.s32.totalorder %s33, 0
      %p259 = por %p257, %p258
      %s261 = sadd.s32 %s260, 1
      %p264 = scmp.eq.s32.totalorder %s27, 1
      %p265 = scmp.ne.s32.totalorder %s260, %s262
      %p266 = scmp.eq.s32.totalorder %s27, 0
      %p267 = por %p265, %p266
      %p268 = scmp.ne.s32.totalorder %s260, %s262
      %p269 = scmp.eq.s32.totalorder %s32, 1
      %p270 = por %p268, %p269
      %p271 = scmp.ne.s32.totalorder %s262, %s263
      %p272 = scmp.eq.s32.totalorder %s32, 0
      %p273 = por %p271, %p272
      %p274 = scmp.ne.s32.totalorder %s262, %s263
      %p275 = scmp.eq.s32.totalorder %s33, 1
      %p276 = por %p274, %p275
      %p278 = scmp.ne.s32.totalorder %s263, %s277
      %p279 = scmp.eq.s32.totalorder %s33, 0
      %p280 = por %p278, %p279
      %p281 = scmp.le.s32.totalorder 1, %s27
      %p282 = scmp.lt.s32.totalorder %s27, 3
      %p283 = pnand %p281, %p282
      %p284 = pneg %p283
      // Predicated region
      $region9: #{tpu_custom_call.1} parent=5 // pred_check
        _
      $region10: #{tpu_custom_call.1} parent=5 // pred_check_branch
        %286 = sbr.rel (%p283) target = $region12
      $region11: #{tpu_custom_call.1} parent=5 // pred_region
        %s287 = ssub.s32 %s27, 1
        // Predicated region
        $region13: #{tpu_custom_call.1} parent=11 // pred_check
          %p288 = pneg %p48
        $region14: #{tpu_custom_call.1} parent=11 // pred_check_branch
          %290 = sbr.rel (%p288) target = $region16
        $region15: #{tpu_custom_call.1} parent=11 // pred_region
          %s292 = ssub.s32 256, 256
          %293 = vsyncadd [#allocation7], %s292
          %s294 = sshll.u32 [#allocation6], 4
          %s295 = int_to_ptr.vmem [resolvable:$true] %s294
          %300 = dma.hbm_to_vmem [thread:$0]  %s0, 256, %s295, [#allocation7], 128, 128, 8
        $region16: #{tpu_custom_call.1} parent=11 // pred_fallthru
          _
        // Predicated region
        $region17: #{tpu_custom_call.1} parent=11 // pred_check
          %p301 = pneg %p69
        $region18: #{tpu_custom_call.1} parent=11 // pred_check_branch
          %303 = sbr.rel (%p301) target = $region20
        $region19: #{tpu_custom_call.1} parent=11 // pred_region
          %s305 = ssub.s32 512, 512
          %306 = vsyncadd [#allocation10], %s305
          %s307 = sshll.u32 [#allocation9], 4
          %s308 = int_to_ptr.vmem [resolvable:$true] %s307
          %313 = dma.hbm_to_vmem [thread:$0]  %s1, 512, %s308, [#allocation10], 128, 128, 8
        $region20: #{tpu_custom_call.1} parent=11 // pred_fallthru
          _
        // Predicated region
        $region21: #{tpu_custom_call.1} parent=11 // pred_check
          %p314 = pneg %p90
        $region22: #{tpu_custom_call.1} parent=11 // pred_check_branch
          %316 = sbr.rel (%p314) target = $region24
        $region23: #{tpu_custom_call.1} parent=11 // pred_region
          %s318 = ssub.s32 512, 512
          %319 = vsyncadd [#allocation10], %s318
          %s320 = sshll.u32 [#allocation11], 4
          %s321 = int_to_ptr.vmem [resolvable:$true] %s320
          %326 = dma.hbm_to_vmem [thread:$0]  %s2, 512, %s321, [#allocation10], 128, 128, 8
        $region24: #{tpu_custom_call.1} parent=11 // pred_fallthru
          _
        // Predicated region
        $region25: #{tpu_custom_call.1} parent=11 // pred_check
          %p327 = pneg %p111
        $region26: #{tpu_custom_call.1} parent=11 // pred_check_branch
          %329 = sbr.rel (%p327) target = $region28
        $region27: #{tpu_custom_call.1} parent=11 // pred_region
          %s331 = ssub.s32 256, 256
          %332 = vsyncadd [#allocation13], %s331
          %s333 = sshll.u32 [#allocation12], 4
          %s334 = int_to_ptr.vmem [resolvable:$true] %s333
          %339 = dma.hbm_to_vmem [thread:$0]  %s3, 256, %s334, [#allocation13], 128, 128, 8
        $region28: #{tpu_custom_call.1} parent=11 // pred_fallthru
          _
        // Predicated region
        $region29: #{tpu_custom_call.1} parent=11 // pred_check
          %p340 = pneg %p132
        $region30: #{tpu_custom_call.1} parent=11 // pred_check_branch
          %342 = sbr.rel (%p340) target = $region32
        $region31: #{tpu_custom_call.1} parent=11 // pred_region
          %s344 = ssub.s32 128, 128
          %345 = vsyncadd [#allocation13], %s344
          %s347 = sshll.u32 [#allocation14], 4
          %s348 = int_to_ptr.vmem [resolvable:$true] %s347
          %350 = dma.hbm_to_vmem [thread:$0]  %s4, 128, %s348, [#allocation13]
        $region32: #{tpu_custom_call.1} parent=11 // pred_fallthru
          _
        // Predicated region
        $region33: #{tpu_custom_call.1} parent=11 // pred_check
          %p351 = pneg %p153
        $region34: #{tpu_custom_call.1} parent=11 // pred_check_branch
          %353 = sbr.rel (%p351) target = $region36
        $region35: #{tpu_custom_call.1} parent=11 // pred_region
          %s355 = ssub.s32 128, 128
          %356 = vsyncadd [#allocation16], %s355
          %s358 = sshll.u32 [#allocation15], 4
          %s359 = int_to_ptr.vmem [resolvable:$true] %s358
          %361 = dma.hbm_to_vmem [thread:$0]  %s5, 128, %s359, [#allocation16]
        $region36: #{tpu_custom_call.1} parent=11 // pred_fallthru
          _
        // Predicated region
        $region37: #{tpu_custom_call.1} parent=11 // pred_check
          %p362 = pneg %p174
        $region38: #{tpu_custom_call.1} parent=11 // pred_check_branch
          %364 = sbr.rel (%p362) target = $region40
        $region39: #{tpu_custom_call.1} parent=11 // pred_region
          %s366 = ssub.s32 128, 128
          %367 = vsyncadd [#allocation16], %s366
          %s369 = sshll.u32 [#allocation17], 4
          %s370 = int_to_ptr.vmem [resolvable:$true] %s369
          %372 = dma.hbm_to_vmem [thread:$0]  %s6, 128, %s370, [#allocation16]
        $region40: #{tpu_custom_call.1} parent=11 // pred_fallthru
          _
      $region12: #{tpu_custom_call.1} parent=5 // pred_fallthru
        _
      %p373 = scmp.lt.s32.totalorder %s27, 2
      // Predicated region
      $region41: #{tpu_custom_call.1} parent=5 // pred_check
        %p374 = pneg %p373
      $region42: #{tpu_custom_call.1} parent=5 // pred_check_branch
        %376 = sbr.rel (%p374) target = $region44
      $region43: #{tpu_custom_call.1} parent=5 // pred_region
        // Predicated region
        $region45: #{tpu_custom_call.1} parent=43 // pred_check
          %p377 = pneg %p194
        $region46: #{tpu_custom_call.1} parent=43 // pred_check_branch
          %379 = sbr.rel (%p377) target = $region48
        $region47: #{tpu_custom_call.1} parent=43 // pred_region
          %s380 = sand.u32 %s27, 1
          %s381 = scalar_lea.sflag [#allocation19], %s380
          %s382 = sand.u32 %s184, 1
          %s383 = smul.addr %s382, 32
          %s384 = scalar_lea.vmem [#allocation18], %s383
          %s385 = smul.u32 4, %s27
          %s387 = ssub.s32 512, 512
          %388 = vsyncadd %s381, %s387
          %s389 = smul.addr %s385, 128
          %s390 = scalar_lea.hbm %s7, %s389
          %s391 = sshll.u32 %s384, 4
          %s392 = int_to_ptr.vmem [resolvable:$true] %s391
          %397 = dma.hbm_to_vmem [thread:$0]  %s390, 512, %s392, %s381, 128, 128, 8
        $region48: #{tpu_custom_call.1} parent=43 // pred_fallthru
          _
        // Predicated region
        $region49: #{tpu_custom_call.1} parent=43 // pred_check
          %p398 = pneg %p220
        $region50: #{tpu_custom_call.1} parent=43 // pred_check_branch
          %400 = sbr.rel (%p398) target = $region52
        $region51: #{tpu_custom_call.1} parent=43 // pred_region
          %s401 = sand.u32 %s27, 1
          %s402 = scalar_lea.sflag [#allocation19], %s401
          %s403 = sand.u32 %s210, 1
          %s404 = smul.addr %s403, 32
          %s405 = scalar_lea.vmem [#allocation20], %s404
          %s406 = smul.u32 4, %s27
          %s408 = ssub.s32 512, 512
          %409 = vsyncadd %s402, %s408
          %s410 = smul.addr %s406, 128
          %s411 = scalar_lea.hbm %s8, %s410
          %s412 = sshll.u32 %s405, 4
          %s413 = int_to_ptr.vmem [resolvable:$true] %s412
          %418 = dma.hbm_to_vmem [thread:$0]  %s411, 512, %s413, %s402, 128, 128, 8
        $region52: #{tpu_custom_call.1} parent=43 // pred_fallthru
          _
        // Predicated region
        $region53: #{tpu_custom_call.1} parent=43 // pred_check
          %p419 = pneg %p246
        $region54: #{tpu_custom_call.1} parent=43 // pred_check_branch
          %421 = sbr.rel (%p419) target = $region56
        $region55: #{tpu_custom_call.1} parent=43 // pred_region
          %s422 = sand.u32 %s236, 1
          %s423 = scalar_lea.sflag [#allocation22], %s422
          %s424 = sand.u32 %s236, 1
          %s425 = smul.addr %s424, 32
          %s426 = scalar_lea.vmem [#allocation21], %s425
          %s427 = smul.u32 4, %s27
          %s429 = ssub.s32 512, 512
          %430 = vsyncadd %s423, %s429
          %s431 = smul.addr %s427, 128
          %s432 = scalar_lea.hbm %s9, %s431
          %s433 = sshll.u32 %s426, 4
          %s434 = int_to_ptr.vmem [resolvable:$true] %s433
          %439 = dma.hbm_to_vmem [thread:$0]  %s432, 512, %s434, %s423, 128, 128, 8
        $region56: #{tpu_custom_call.1} parent=43 // pred_fallthru
          _
      $region44: #{tpu_custom_call.1} parent=5 // pred_fallthru
        _
      %p440 = scmp.le.s32.totalorder 1, %s27
      %p441 = scmp.lt.s32.totalorder %s27, 3
      %p442 = pnand %p440, %p441
      %p443 = pneg %p442
      // Predicated region
      $region57: #{tpu_custom_call.1} parent=5 // pred_check
        _
      $region58: #{tpu_custom_call.1} parent=5 // pred_check_branch
        %445 = sbr.rel (%p442) target = $region60
      $region59: #{tpu_custom_call.1} parent=5 // pred_region
        %s446 = ssub.s32 %s27, 1
        // Predicated region
        $region61: #{tpu_custom_call.1} parent=59 // pred_check
          %p447 = pneg %p48
        $region62: #{tpu_custom_call.1} parent=59 // pred_check_branch
          %449 = sbr.rel (%p447) target = $region64
        $region63: #{tpu_custom_call.1} parent=59 // pred_region
          %450 = dma.done [#allocation7], 256
        $region64: #{tpu_custom_call.1} parent=59 // pred_fallthru
          _
        // Predicated region
        $region65: #{tpu_custom_call.1} parent=59 // pred_check
          %p451 = pneg %p69
        $region66: #{tpu_custom_call.1} parent=59 // pred_check_branch
          %453 = sbr.rel (%p451) target = $region68
        $region67: #{tpu_custom_call.1} parent=59 // pred_region
          %454 = dma.done [#allocation10], 512
        $region68: #{tpu_custom_call.1} parent=59 // pred_fallthru
          _
        // Predicated region
        $region69: #{tpu_custom_call.1} parent=59 // pred_check
          %p455 = pneg %p90
        $region70: #{tpu_custom_call.1} parent=59 // pred_check_branch
          %457 = sbr.rel (%p455) target = $region72
        $region71: #{tpu_custom_call.1} parent=59 // pred_region
          %458 = dma.done [#allocation10], 512
        $region72: #{tpu_custom_call.1} parent=59 // pred_fallthru
          _
        // Predicated region
        $region73: #{tpu_custom_call.1} parent=59 // pred_check
          %p459 = pneg %p111
        $region74: #{tpu_custom_call.1} parent=59 // pred_check_branch
          %461 = sbr.rel (%p459) target = $region76
        $region75: #{tpu_custom_call.1} parent=59 // pred_region
          %462 = dma.done [#allocation13], 256
        $region76: #{tpu_custom_call.1} parent=59 // pred_fallthru
          _
        // Predicated region
        $region77: #{tpu_custom_call.1} parent=59 // pred_check
          %p463 = pneg %p132
        $region78: #{tpu_custom_call.1} parent=59 // pred_check_branch
          %465 = sbr.rel (%p463) target = $region80
        $region79: #{tpu_custom_call.1} parent=59 // pred_region
          %466 = dma.done [#allocation13], 128
        $region80: #{tpu_custom_call.1} parent=59 // pred_fallthru
          _
        // Predicated region
        $region81: #{tpu_custom_call.1} parent=59 // pred_check
          %p467 = pneg %p153
        $region82: #{tpu_custom_call.1} parent=59 // pred_check_branch
          %469 = sbr.rel (%p467) target = $region84
        $region83: #{tpu_custom_call.1} parent=59 // pred_region
          %470 = dma.done [#allocation16], 128
        $region84: #{tpu_custom_call.1} parent=59 // pred_fallthru
          _
        // Predicated region
        $region85: #{tpu_custom_call.1} parent=59 // pred_check
          %p471 = pneg %p174
        $region86: #{tpu_custom_call.1} parent=59 // pred_check_branch
          %473 = sbr.rel (%p471) target = $region88
        $region87: #{tpu_custom_call.1} parent=59 // pred_region
          %474 = dma.done [#allocation16], 128
        $region88: #{tpu_custom_call.1} parent=59 // pred_fallthru
          _
        %s475 = sand.u32 %s32, 1
        %s476 = scalar_lea.sflag [#allocation19], %s475
        %s477 = sand.u32 %s187, 1
        %s478 = smul.addr %s477, 32
        %s479 = scalar_lea.vmem [#allocation18], %s478
        // Predicated region
        $region89: #{tpu_custom_call.1} parent=59 // pred_check
          %p480 = pneg %p200
        $region90: #{tpu_custom_call.1} parent=59 // pred_check_branch
          %482 = sbr.rel (%p480) target = $region92
        $region91: #{tpu_custom_call.1} parent=59 // pred_region
          %483 = dma.done %s476, 512
        $region92: #{tpu_custom_call.1} parent=59 // pred_fallthru
          _
        %s484 = sand.u32 %s32, 1
        %s485 = scalar_lea.sflag [#allocation19], %s484
        %s486 = sand.u32 %s213, 1
        %s487 = smul.addr %s486, 32
        %s488 = scalar_lea.vmem [#allocation20], %s487
        // Predicated region
        $region93: #{tpu_custom_call.1} parent=59 // pred_check
          %p489 = pneg %p226
        $region94: #{tpu_custom_call.1} parent=59 // pred_check_branch
          %491 = sbr.rel (%p489) target = $region96
        $region95: #{tpu_custom_call.1} parent=59 // pred_region
          %492 = dma.done %s485, 512
        $region96: #{tpu_custom_call.1} parent=59 // pred_fallthru
          _
        %s493 = sand.u32 %s239, 1
        %s494 = scalar_lea.sflag [#allocation22], %s493
        %s495 = sand.u32 %s239, 1
        %s496 = smul.addr %s495, 32
        %s497 = scalar_lea.vmem [#allocation21], %s496
        // Predicated region
        $region97: #{tpu_custom_call.1} parent=59 // pred_check
          %p498 = pneg %p252
        $region98: #{tpu_custom_call.1} parent=59 // pred_check_branch
          %500 = sbr.rel (%p498) target = $region100
        $region99: #{tpu_custom_call.1} parent=59 // pred_region
          %501 = dma.done %s494, 512
        $region100: #{tpu_custom_call.1} parent=59 // pred_fallthru
          _
        %p502 = pneg %p48
        %p503 = pneg %p45
        %p504 = pneg %p69
        %p505 = pneg %p66
        %p506 = pneg %p90
        %p507 = pneg %p87
        %p508 = pneg %p111
        %p509 = pneg %p108
        %p510 = pneg %p132
        %p511 = pneg %p129
        %p512 = pneg %p153
        %p513 = pneg %p150
        %p514 = pneg %p174
        %p515 = pneg %p171
        %s516 = sand.u32 %s32, 1
        %s517 = scalar_lea.sflag [#allocation19], %s516
        %s518 = sand.u32 %s187, 1
        %s519 = smul.addr %s518, 32
        %s520 = scalar_lea.vmem [#allocation18], %s519
        %p521 = pneg %p200
        %p522 = pneg %p197
        %s523 = sand.u32 %s32, 1
        %s524 = scalar_lea.sflag [#allocation19], %s523
        %s525 = sand.u32 %s213, 1
        %s526 = smul.addr %s525, 32
        %s527 = scalar_lea.vmem [#allocation20], %s526
        %p528 = pneg %p226
        %p529 = pneg %p223
        %s530 = sand.u32 %s239, 1
        %s531 = scalar_lea.sflag [#allocation22], %s530
        %s532 = sand.u32 %s239, 1
        %s533 = smul.addr %s532, 32
        %s534 = scalar_lea.vmem [#allocation21], %s533
        %p535 = pneg %p252
        %p536 = pneg %p249
        %p537 = pneg %p273
        %p538 = pneg %p270
        %s539 = smul.u32 4, %s32
        %s540 = smul.u32 4, %s32
        %s541 = smul.u32 4, %s32
        %p542 = scmp.eq.s32.totalorder %s32, 0
        // Predicated region
        $region101: #{tpu_custom_call.1} parent=59 // pred_check
          %p543 = pneg %p542
        $region102: #{tpu_custom_call.1} parent=59 // pred_check_branch
          %545 = sbr.rel (%p543) target = $region104
        $region103: #{tpu_custom_call.1} parent=59 // pred_region
          %v546 = vld [vmem:[#allocation6] sm:$0xff]
          %v547 = vld [vmem:[#allocation6 + $0x8] sm:$0xff]
          %v548 = vld [vmem:[#allocation9] sm:$0xff]
          %v549 = vld [vmem:[#allocation9 + $0x8] sm:$0xff]
          %v550 = vld [vmem:[#allocation9 + $0x10] sm:$0xff]
          %v551 = vld [vmem:[#allocation9 + $0x18] sm:$0xff]
          %vm552 = vcmask 261120
          %v554 = vsel %vm552, %v546, 0
          %v557 = vsel %vm552, %v547, 0
          %559 = vmatprep.subr.mxu0 0.0
          %560 = vmatpush1.msra.mxu0 %v548
          %561 = vmatprep.subr.mxu0 0.0
          %562 = vmatpush1.msra.mxu0 %v549
          %563 = vmatprep.subr.mxu0 0.0
          %564 = vmatpush1.msra.mxu0 %v550
          %565 = vmatprep.subr.mxu0 0.0
          %566 = vmatpush1.msra.mxu0 %v551
          %567 = vmatprep.subr.mxu0 0.0
          %568 = vmatpush1.msra.mxu0 0.0
          %569 = vmatprep.subr.mxu0 0.0
          %570 = vmatpush1.msra.mxu0 0.0
          %571 = vmatprep.subr.mxu0 0.0
          %572 = vmatpush1.msra.mxu0 0.0
          %573 = vmatprep.subr.mxu0 0.0
          %574 = vmatpush1.msra.mxu0 0.0
          %575 = vmatprep.subr.mxu0 0.0
          %576 = vmatpush1.msra.mxu0 0.0
          %577 = vmatprep.subr.mxu0 0.0
          %578 = vmatpush1.msra.mxu0 0.0
          %579 = vmatprep.subr.mxu0 0.0
          %580 = vmatpush1.msra.mxu0 0.0
          %581 = vmatprep.subr.mxu0 0.0
          %582 = vmatpush1.msra.mxu0 0.0
          %583 = vmatprep.subr.mxu0 0.0
          %584 = vmatpush1.msra.mxu0 0.0
          %585 = vmatprep.subr.mxu0 0.0
          %586 = vmatpush1.msra.mxu0 0.0
          %587 = vmatprep.subr.mxu0 0.0
          %588 = vmatpush1.msra.mxu0 0.0
          %589 = vmatprep.subr.mxu0 0.0
          %590 = vmatpush1.msra.mxu0 0.0
          %591 = vmatprep.subr.mxu0 0.0
          %592 = vmatpush1.msra.mxu0 0.0
          %593 = vmatprep.subr.mxu0 0.0
          %594 = vmatpush1.msra.mxu0 0.0
          %595 = vmatprep.subr.mxu0 0.0
          %596 = vmatpush1.msra.mxu0 0.0
          %597 = vmatprep.subr.mxu0 0.0
          %598 = vmatpush1.msra.mxu0 0.0
          %599 = vmatprep.subr.mxu0 0.0
          %600 = vmatpush1.msra.mxu0 0.0
          %601 = vmatprep.subr.mxu0 0.0
          %602 = vmatpush1.msra.mxu0 0.0
          %603 = vmatprep.subr.mxu0 0.0
          %604 = vmatpush1.msra.mxu0 0.0
          %605 = vmatprep.subr.mxu0 0.0
          %606 = vmatpush1.msra.mxu0 0.0
          %607 = vmatprep.subr.mxu0 0.0
          %608 = vmatpush1.msra.mxu0 0.0
          %609 = vmatprep.subr.mxu0 0.0
          %610 = vmatpush1.msra.mxu0 0.0
          %611 = vmatprep.subr.mxu0 0.0
          %612 = vmatpush1.msra.mxu0 0.0
          %613 = vmatprep.subr.mxu0 0.0
          %614 = vmatpush1.msra.mxu0 0.0
          %615 = vmatprep.subr.mxu0 0.0
          %616 = vmatpush1.msra.mxu0 0.0
          %617 = vmatprep.subr.mxu0 0.0
          %618 = vmatpush1.msra.mxu0 0.0
          %619 = vmatprep.subr.mxu0 0.0
          %620 = vmatpush1.msra.mxu0 0.0
          %621 = vmatprep.subr.mxu0 0.0
          %622 = vmatpush1.msra.mxu0 0.0
          %623 = vmatprep.mubr.f32.mxu0 0.0
          %624 = vmatmul.mubr.f32.gmra.mrb[0].mxu0 %v554
          %v625 = vpop.f32.mrb[0].mxu0
          %v626 = vadd.f32 0.0, %v625
          %v627 = vpop.f32.mrb[0].mxu0
          %628 = vmatprep.mubr.f32.mxu0 0.0
          %629 = vmatmul.mubr.f32.gmra.mrb[0].mxu0 %v557
          %v630 = vpop.f32.mrb[0].mxu0
          %v631 = vadd.f32 0.0, %v630
          %v632 = vpop.f32.mrb[0].mxu0
          %633 = vdwg.mxu0
          %vm634 = vcmask 130048
          %635 = vst.msk [vmem:[#allocation2] sm:$0xff] %vm634, %v626
          %636 = vst.msk [vmem:[#allocation2 + $0x8] sm:$0xff] %vm634, %v631
          %v637 = vlaneseq
          %v638 = vand.u32 %v637, 127
          %vm639 = vcmp.ge.s32.totalorder %v638, 16
          %vm640 = vcmp.lt.s32.totalorder %v638, 24
          %vm641 = vmand %vm639, %vm640
          %v642 = vsel %vm641, 1, 0
          %v643 = vcvt.s32.f32 %v642
          %v644 = vld [vmem:[#allocation11] sm:$0xff]
          %v645 = vld [vmem:[#allocation11 + $0x8] sm:$0xff]
          %v646 = vld [vmem:[#allocation11 + $0x10] sm:$0xff]
          %v647 = vld [vmem:[#allocation11 + $0x18] sm:$0xff]
          %648 = vmatprep.subr.mxu0 0.0
          %649 = vmatpush1.msra.mxu0 %v644
          %650 = vmatprep.subr.mxu0 0.0
          %651 = vmatpush1.msra.mxu0 %v645
          %652 = vmatprep.subr.mxu0 0.0
          %653 = vmatpush1.msra.mxu0 %v646
          %654 = vmatprep.subr.mxu0 0.0
          %655 = vmatpush1.msra.mxu0 %v647
          %656 = vmatprep.subr.mxu0 0.0
          %657 = vmatpush1.msra.mxu0 0.0
          %658 = vmatprep.subr.mxu0 0.0
          %659 = vmatpush1.msra.mxu0 0.0
          %660 = vmatprep.subr.mxu0 0.0
          %661 = vmatpush1.msra.mxu0 0.0
          %662 = vmatprep.subr.mxu0 0.0
          %663 = vmatpush1.msra.mxu0 0.0
          %664 = vmatprep.subr.mxu0 0.0
          %665 = vmatpush1.msra.mxu0 0.0
          %666 = vmatprep.subr.mxu0 0.0
          %667 = vmatpush1.msra.mxu0 0.0
          %668 = vmatprep.subr.mxu0 0.0
          %669 = vmatpush1.msra.mxu0 0.0
          %670 = vmatprep.subr.mxu0 0.0
          %671 = vmatpush1.msra.mxu0 0.0
          %672 = vmatprep.subr.mxu0 0.0
          %673 = vmatpush1.msra.mxu0 0.0
          %674 = vmatprep.subr.mxu0 0.0
          %675 = vmatpush1.msra.mxu0 0.0
          %676 = vmatprep.subr.mxu0 0.0
          %677 = vmatpush1.msra.mxu0 0.0
          %678 = vmatprep.subr.mxu0 0.0
          %679 = vmatpush1.msra.mxu0 0.0
          %680 = vmatprep.subr.mxu0 0.0
          %681 = vmatpush1.msra.mxu0 0.0
          %682 = vmatprep.subr.mxu0 0.0
          %683 = vmatpush1.msra.mxu0 0.0
          %684 = vmatprep.subr.mxu0 0.0
          %685 = vmatpush1.msra.mxu0 0.0
          %686 = vmatprep.subr.mxu0 0.0
          %687 = vmatpush1.msra.mxu0 0.0
          %688 = vmatprep.subr.mxu0 0.0
          %689 = vmatpush1.msra.mxu0 0.0
          %690 = vmatprep.subr.mxu0 0.0
          %691 = vmatpush1.msra.mxu0 0.0
          %692 = vmatprep.subr.mxu0 0.0
          %693 = vmatpush1.msra.mxu0 0.0
          %694 = vmatprep.subr.mxu0 0.0
          %695 = vmatpush1.msra.mxu0 0.0
          %696 = vmatprep.subr.mxu0 0.0
          %697 = vmatpush1.msra.mxu0 0.0
          %698 = vmatprep.subr.mxu0 0.0
          %699 = vmatpush1.msra.mxu0 0.0
          %700 = vmatprep.subr.mxu0 0.0
          %701 = vmatpush1.msra.mxu0 0.0
          %702 = vmatprep.subr.mxu0 0.0
          %703 = vmatpush1.msra.mxu0 0.0
          %704 = vmatprep.subr.mxu0 0.0
          %705 = vmatpush1.msra.mxu0 0.0
          %706 = vmatprep.subr.mxu0 0.0
          %707 = vmatpush1.msra.mxu0 0.0
          %708 = vmatprep.subr.mxu0 0.0
          %709 = vmatpush1.msra.mxu0 0.0
          %710 = vmatprep.subr.mxu0 0.0
          %711 = vmatpush1.msra.mxu0 0.0
          %712 = vmatprep.mubr.f32.mxu0 0.0
          %713 = vmatmul.mubr.f32.gmra.mrb[0].mxu0 %v554
          %v714 = vpop.f32.mrb[0].mxu0
          %v715 = vadd.f32 %v643, %v714
          %v716 = vpop.f32.mrb[0].mxu0
          %717 = vmatprep.mubr.f32.mxu0 0.0
          %718 = vmatmul.mubr.f32.gmra.mrb[0].mxu0 %v557
          %v719 = vpop.f32.mrb[0].mxu0
          %v720 = vadd.f32 %v643, %v719
          %v721 = vpop.f32.mrb[0].mxu0
          %722 = vdwg.mxu0
          %vm723 = vcmask 326656
          %724 = vst.msk [vmem:[#allocation3] sm:$0xff] %vm723, %v715
          %725 = vst.msk [vmem:[#allocation3 + $0x8] sm:$0xff] %vm723, %v720
          %vm726 = vcmask 57344
          %727 = vst.msk [vmem:[#allocation4] sm:$0x1] %vm726, -inf
          %vm728 = vcmask 195584
          %729 = vst.msk [vmem:[#allocation5] sm:$0xff] %vm728, 0.0
          %730 = vst.msk [vmem:[#allocation5 + $0x8] sm:$0xff] %vm728, 0.0
        $region104: #{tpu_custom_call.1} parent=59 // pred_fallthru
          _
        %v731 = vld [vmem:[%s479] sm:$0xff]
        %v732 = vld [vmem:[%s479 + $0x8] sm:$0xff]
        %v733 = vld [vmem:[%s479 + $0x10] sm:$0xff]
        %v734 = vld [vmem:[%s479 + $0x18] sm:$0xff]
        %v735 = vld [vmem:[%s488] sm:$0xff]
        %v736 = vld [vmem:[%s488 + $0x8] sm:$0xff]
        %v737 = vld [vmem:[%s488 + $0x10] sm:$0xff]
        %v738 = vld [vmem:[%s488 + $0x18] sm:$0xff]
        %v739 = vlaneseq
        %v740 = vand.u32 %v739, 127
        %741 = vset.pattern.permute.xlu0 0
        %742 = vperm.xlu0 %741, %v731
        %v743 = vpop.permute.xlu0 %742
        %744 = vset.pattern.permute.xlu0 0
        %745 = vperm.xlu0 %744, %v732
        %v746 = vpop.permute.xlu0 %745
        %747 = vset.pattern.permute.xlu0 0
        %748 = vperm.xlu0 %747, %v733
        %v749 = vpop.permute.xlu0 %748
        %750 = vset.pattern.permute.xlu0 0
        %751 = vperm.xlu0 %750, %v734
        %v752 = vpop.permute.xlu0 %751
        %vm753 = vcmp.eq.s32.totalorder %v743, %v740
        %vm754 = vcmp.eq.s32.totalorder %v746, %v740
        %vm755 = vcmp.eq.s32.totalorder %v749, %v740
        %vm756 = vcmp.eq.s32.totalorder %v752, %v740
        %v757 = vsel %vm753, 1, 0
        %v758 = vsel %vm754, 1, 0
        %v759 = vsel %vm755, 1, 0
        %v760 = vsel %vm756, 1, 0
        %v761 = vcvt.s32.f32 %v757
        %v762 = vcvt.s32.f32 %v758
        %v763 = vcvt.s32.f32 %v759
        %v764 = vcvt.s32.f32 %v760
        %765 = vset.pattern.permute.xlu0 0
        %766 = vperm.xlu0 %765, %v735
        %v767 = vpop.permute.xlu0 %766
        %768 = vset.pattern.permute.xlu0 0
        %769 = vperm.xlu0 %768, %v736
        %v770 = vpop.permute.xlu0 %769
        %771 = vset.pattern.permute.xlu0 0
        %772 = vperm.xlu0 %771, %v737
        %v773 = vpop.permute.xlu0 %772
        %774 = vset.pattern.permute.xlu0 0
        %775 = vperm.xlu0 %774, %v738
        %v776 = vpop.permute.xlu0 %775
        %vm777 = vcmp.eq.s32.totalorder %v767, %v740
        %vm778 = vcmp.eq.s32.totalorder %v770, %v740
        %vm779 = vcmp.eq.s32.totalorder %v773, %v740
        %vm780 = vcmp.eq.s32.totalorder %v776, %v740
        %v781 = vsel %vm777, 1, 0
        %v782 = vsel %vm778, 1, 0
        %v783 = vsel %vm779, 1, 0
        %v784 = vsel %vm780, 1, 0
        %v785 = vcvt.s32.f32 %v781
        %v786 = vcvt.s32.f32 %v782
        %v787 = vcvt.s32.f32 %v783
        %v788 = vcvt.s32.f32 %v784
        %v789 = vld [vmem:[#allocation2] sm:$0xff]
        %v790 = vld [vmem:[#allocation2 + $0x8] sm:$0xff]
        %vm791 = vcmask 130048
        %v793 = vsel %vm791, %v785, 0
        %v796 = vsel %vm791, %v786, 0
        %v799 = vsel %vm791, %v787, 0
        %v802 = vsel %vm791, %v788, 0
        %804 = vmatprep.subr.mxu0 0.0
        %805 = vmatpush1.msra.mxu0 %v789
        %806 = vmatprep.subr.mxu0 0.0
        %807 = vmatpush1.msra.mxu0 %v790
        %808 = vmatprep.subr.mxu0 0.0
        %809 = vmatpush1.msra.mxu0 0.0
        %810 = vmatprep.subr.mxu0 0.0
        %811 = vmatpush1.msra.mxu0 0.0
        %812 = vmatprep.subr.mxu0 0.0
        %813 = vmatpush1.msra.mxu0 0.0
        %814 = vmatprep.subr.mxu0 0.0
        %815 = vmatpush1.msra.mxu0 0.0
        %816 = vmatprep.subr.mxu0 0.0
        %817 = vmatpush1.msra.mxu0 0.0
        %818 = vmatprep.subr.mxu0 0.0
        %819 = vmatpush1.msra.mxu0 0.0
        %820 = vmatprep.subr.mxu0 0.0
        %821 = vmatpush1.msra.mxu0 0.0
        %822 = vmatprep.subr.mxu0 0.0
        %823 = vmatpush1.msra.mxu0 0.0
        %824 = vmatprep.subr.mxu0 0.0
        %825 = vmatpush1.msra.mxu0 0.0
        %826 = vmatprep.subr.mxu0 0.0
        %827 = vmatpush1.msra.mxu0 0.0
        %828 = vmatprep.subr.mxu0 0.0
        %829 = vmatpush1.msra.mxu0 0.0
        %830 = vmatprep.subr.mxu0 0.0
        %831 = vmatpush1.msra.mxu0 0.0
        %832 = vmatprep.subr.mxu0 0.0
        %833 = vmatpush1.msra.mxu0 0.0
        %834 = vmatprep.subr.mxu0 0.0
        %835 = vmatpush1.msra.mxu0 0.0
        %836 = vmatprep.subr.mxu0 0.0
        %837 = vmatpush1.msra.mxu0 0.0
        %838 = vmatprep.subr.mxu0 0.0
        %839 = vmatpush1.msra.mxu0 0.0
        %840 = vmatprep.subr.mxu0 0.0
        %841 = vmatpush1.msra.mxu0 0.0
        %842 = vmatprep.subr.mxu0 0.0
        %843 = vmatpush1.msra.mxu0 0.0
        %844 = vmatprep.subr.mxu0 0.0
        %845 = vmatpush1.msra.mxu0 0.0
        %846 = vmatprep.subr.mxu0 0.0
        %847 = vmatpush1.msra.mxu0 0.0
        %848 = vmatprep.subr.mxu0 0.0
        %849 = vmatpush1.msra.mxu0 0.0
        %850 = vmatprep.subr.mxu0 0.0
        %851 = vmatpush1.msra.mxu0 0.0
        %852 = vmatprep.subr.mxu0 0.0
        %853 = vmatpush1.msra.mxu0 0.0
        %854 = vmatprep.subr.mxu0 0.0
        %855 = vmatpush1.msra.mxu0 0.0
        %856 = vmatprep.subr.mxu0 0.0
        %857 = vmatpush1.msra.mxu0 0.0
        %858 = vmatprep.subr.mxu0 0.0
        %859 = vmatpush1.msra.mxu0 0.0
        %860 = vmatprep.subr.mxu0 0.0
        %861 = vmatpush1.msra.mxu0 0.0
        %862 = vmatprep.subr.mxu0 0.0
        %863 = vmatpush1.msra.mxu0 0.0
        %864 = vmatprep.subr.mxu0 0.0
        %865 = vmatpush1.msra.mxu0 0.0
        %866 = vmatprep.subr.mxu0 0.0
        %867 = vmatpush1.msra.mxu0 0.0
        %868 = vmatprep.mubr.f32.mxu0 0.0
        %869 = vmatmul.mubr.f32.gmra.mrb[0].mxu0 %v793
        %v870 = vpop.f32.mrb[0].mxu0
        %v871 = vadd.f32 0.0, %v870
        %v872 = vpop.f32.mrb[0].mxu0
        %873 = vmatprep.mubr.f32.mxu0 0.0
        %874 = vmatmul.mubr.f32.gmra.mrb[0].mxu0 %v796
        %v875 = vpop.f32.mrb[0].mxu0
        %v876 = vadd.f32 0.0, %v875
        %v877 = vpop.f32.mrb[0].mxu0
        %878 = vmatprep.mubr.f32.mxu0 0.0
        %879 = vmatmul.mubr.f32.gmra.mrb[0].mxu0 %v799
        %v880 = vpop.f32.mrb[0].mxu0
        %v881 = vadd.f32 0.0, %v880
        %v882 = vpop.f32.mrb[0].mxu0
        %883 = vmatprep.mubr.f32.mxu0 0.0
        %884 = vmatmul.mubr.f32.gmra.mrb[0].mxu0 %v802
        %v885 = vpop.f32.mrb[0].mxu0
        %v886 = vadd.f32 0.0, %v885
        %v887 = vpop.f32.mrb[0].mxu0
        %888 = vdwg.mxu0
        %v889 = vld [vmem:[#allocation3] sm:$0xff]
        %v890 = vld [vmem:[#allocation3 + $0x8] sm:$0xff]
        %v892 = vsel %vm791, %v761, 0
        %v895 = vsel %vm791, %v762, 0
        %v898 = vsel %vm791, %v763, 0
        %v901 = vsel %vm791, %v764, 0
        %903 = vmatprep.subr.mxu0 0.0
        %904 = vmatpush1.msra.mxu0 %v889
        %905 = vmatprep.subr.mxu0 0.0
        %906 = vmatpush1.msra.mxu0 %v890
        %907 = vmatprep.subr.mxu0 0.0
        %908 = vmatpush1.msra.mxu0 0.0
        %909 = vmatprep.subr.mxu0 0.0
        %910 = vmatpush1.msra.mxu0 0.0
        %911 = vmatprep.subr.mxu0 0.0
        %912 = vmatpush1.msra.mxu0 0.0
        %913 = vmatprep.subr.mxu0 0.0
        %914 = vmatpush1.msra.mxu0 0.0
        %915 = vmatprep.subr.mxu0 0.0
        %916 = vmatpush1.msra.mxu0 0.0
        %917 = vmatprep.subr.mxu0 0.0
        %918 = vmatpush1.msra.mxu0 0.0
        %919 = vmatprep.subr.mxu0 0.0
        %920 = vmatpush1.msra.mxu0 0.0
        %921 = vmatprep.subr.mxu0 0.0
        %922 = vmatpush1.msra.mxu0 0.0
        %923 = vmatprep.subr.mxu0 0.0
        %924 = vmatpush1.msra.mxu0 0.0
        %925 = vmatprep.subr.mxu0 0.0
        %926 = vmatpush1.msra.mxu0 0.0
        %927 = vmatprep.subr.mxu0 0.0
        %928 = vmatpush1.msra.mxu0 0.0
        %929 = vmatprep.subr.mxu0 0.0
        %930 = vmatpush1.msra.mxu0 0.0
        %931 = vmatprep.subr.mxu0 0.0
        %932 = vmatpush1.msra.mxu0 0.0
        %933 = vmatprep.subr.mxu0 0.0
        %934 = vmatpush1.msra.mxu0 0.0
        %935 = vmatprep.subr.mxu0 0.0
        %936 = vmatpush1.msra.mxu0 0.0
        %937 = vmatprep.subr.mxu0 0.0
        %938 = vmatpush1.msra.mxu0 0.0
        %939 = vmatprep.subr.mxu0 0.0
        %940 = vmatpush1.msra.mxu0 0.0
        %941 = vmatprep.subr.mxu0 0.0
        %942 = vmatpush1.msra.mxu0 0.0
        %943 = vmatprep.subr.mxu0 0.0
        %944 = vmatpush1.msra.mxu0 0.0
        %945 = vmatprep.subr.mxu0 0.0
        %946 = vmatpush1.msra.mxu0 0.0
        %947 = vmatprep.subr.mxu0 0.0
        %948 = vmatpush1.msra.mxu0 0.0
        %949 = vmatprep.subr.mxu0 0.0
        %950 = vmatpush1.msra.mxu0 0.0
        %951 = vmatprep.subr.mxu0 0.0
        %952 = vmatpush1.msra.mxu0 0.0
        %953 = vmatprep.subr.mxu0 0.0
        %954 = vmatpush1.msra.mxu0 0.0
        %955 = vmatprep.subr.mxu0 0.0
        %956 = vmatpush1.msra.mxu0 0.0
        %957 = vmatprep.subr.mxu0 0.0
        %958 = vmatpush1.msra.mxu0 0.0
        %959 = vmatprep.subr.mxu0 0.0
        %960 = vmatpush1.msra.mxu0 0.0
        %961 = vmatprep.subr.mxu0 0.0
        %962 = vmatpush1.msra.mxu0 0.0
        %963 = vmatprep.subr.mxu0 0.0
        %964 = vmatpush1.msra.mxu0 0.0
        %965 = vmatprep.subr.mxu0 0.0
        %966 = vmatpush1.msra.mxu0 0.0
        %967 = vmatprep.mubr.f32.mxu0 0.0
        %968 = vmatmul.mubr.f32.gmra.mrb[0].mxu0 %v892
        %v969 = vpop.f32.mrb[0].mxu0
        %v970 = vadd.f32 0.0, %v969
        %v971 = vpop.f32.mrb[0].mxu0
        %972 = vmatprep.mubr.f32.mxu0 0.0
        %973 = vmatmul.mubr.f32.gmra.mrb[0].mxu0 %v895
        %v974 = vpop.f32.mrb[0].mxu0
        %v975 = vadd.f32 0.0, %v974
        %v976 = vpop.f32.mrb[0].mxu0
        %977 = vmatprep.mubr.f32.mxu0 0.0
        %978 = vmatmul.mubr.f32.gmra.mrb[0].mxu0 %v898
        %v979 = vpop.f32.mrb[0].mxu0
        %v980 = vadd.f32 0.0, %v979
        %v981 = vpop.f32.mrb[0].mxu0
        %982 = vmatprep.mubr.f32.mxu0 0.0
        %983 = vmatmul.mubr.f32.gmra.mrb[0].mxu0 %v901
        %v984 = vpop.f32.mrb[0].mxu0
        %v985 = vadd.f32 0.0, %v984
        %v986 = vpop.f32.mrb[0].mxu0
        %987 = vdwg.mxu0
        %v988 = vmul.f32 %v871, %v970
        %v989 = vmul.f32 %v876, %v975
        %v990 = vmul.f32 %v881, %v980
        %v991 = vmul.f32 %v886, %v985
        %v992 = vld [vmem:[#allocation12] sm:$0xff]
        %v993 = vld [vmem:[#allocation12 + $0x8] sm:$0xff]
        %v994 = vld [vmem:[%s497] sm:$0xff]
        %v995 = vld [vmem:[%s497 + $0x8] sm:$0xff]
        %v996 = vld [vmem:[%s497 + $0x10] sm:$0xff]
        %v997 = vld [vmem:[%s497 + $0x18] sm:$0xff]
        %v998 = vld [vmem:[#allocation14] sm:$0xff]
        %vm999 = vcmask 64512
        %v1001 = vsel %vm999, %v994, 0
        %v1004 = vsel %vm999, %v995, 0
        %v1007 = vsel %vm999, %v996, 0
        %v1010 = vsel %vm999, %v997, 0
        %1012 = vmatprep.subr.mxu0 0.0
        %1013 = vmatpush1.msra.mxu0 %v998
        %1014 = vmatprep.subr.mxu0 0.0
        %1015 = vmatpush1.msra.mxu0 0.0
        %1016 = vmatprep.subr.mxu0 0.0
        %1017 = vmatpush1.msra.mxu0 0.0
        %1018 = vmatprep.subr.mxu0 0.0
        %1019 = vmatpush1.msra.mxu0 0.0
        %1020 = vmatprep.subr.mxu0 0.0
        %1021 = vmatpush1.msra.mxu0 0.0
        %1022 = vmatprep.subr.mxu0 0.0
        %1023 = vmatpush1.msra.mxu0 0.0
        %1024 = vmatprep.subr.mxu0 0.0
        %1025 = vmatpush1.msra.mxu0 0.0
        %1026 = vmatprep.subr.mxu0 0.0
        %1027 = vmatpush1.msra.mxu0 0.0
        %1028 = vmatprep.subr.mxu0 0.0
        %1029 = vmatpush1.msra.mxu0 0.0
        %1030 = vmatprep.subr.mxu0 0.0
        %1031 = vmatpush1.msra.mxu0 0.0
        %1032 = vmatprep.subr.mxu0 0.0
        %1033 = vmatpush1.msra.mxu0 0.0
        %1034 = vmatprep.subr.mxu0 0.0
        %1035 = vmatpush1.msra.mxu0 0.0
        %1036 = vmatprep.subr.mxu0 0.0
        %1037 = vmatpush1.msra.mxu0 0.0
        %1038 = vmatprep.subr.mxu0 0.0
        %1039 = vmatpush1.msra.mxu0 0.0
        %1040 = vmatprep.subr.mxu0 0.0
        %1041 = vmatpush1.msra.mxu0 0.0
        %1042 = vmatprep.subr.mxu0 0.0
        %1043 = vmatpush1.msra.mxu0 0.0
        %1044 = vmatprep.subr.mxu0 0.0
        %1045 = vmatpush1.msra.mxu0 0.0
        %1046 = vmatprep.subr.mxu0 0.0
        %1047 = vmatpush1.msra.mxu0 0.0
        %1048 = vmatprep.subr.mxu0 0.0
        %1049 = vmatpush1.msra.mxu0 0.0
        %1050 = vmatprep.subr.mxu0 0.0
        %1051 = vmatpush1.msra.mxu0 0.0
        %1052 = vmatprep.subr.mxu0 0.0
        %1053 = vmatpush1.msra.mxu0 0.0
        %1054 = vmatprep.subr.mxu0 0.0
        %1055 = vmatpush1.msra.mxu0 0.0
        %1056 = vmatprep.subr.mxu0 0.0
        %1057 = vmatpush1.msra.mxu0 0.0
        %1058 = vmatprep.subr.mxu0 0.0
        %1059 = vmatpush1.msra.mxu0 0.0
        %1060 = vmatprep.subr.mxu0 0.0
        %1061 = vmatpush1.msra.mxu0 0.0
        %1062 = vmatprep.subr.mxu0 0.0
        %1063 = vmatpush1.msra.mxu0 0.0
        %1064 = vmatprep.subr.mxu0 0.0
        %1065 = vmatpush1.msra.mxu0 0.0
        %1066 = vmatprep.subr.mxu0 0.0
        %1067 = vmatpush1.msra.mxu0 0.0
        %1068 = vmatprep.subr.mxu0 0.0
        %1069 = vmatpush1.msra.mxu0 0.0
        %1070 = vmatprep.subr.mxu0 0.0
        %1071 = vmatpush1.msra.mxu0 0.0
        %1072 = vmatprep.subr.mxu0 0.0
        %1073 = vmatpush1.msra.mxu0 0.0
        %1074 = vmatprep.subr.mxu0 0.0
        %1075 = vmatpush1.msra.mxu0 0.0
        %1076 = vmatprep.mubr.f32.mxu0 0.0
        %1077 = vmatmul.mubr.f32.gmra.mrb[0].mxu0 %v1001
        %v1078 = vpop.f32.mrb[0].mxu0
        %v1079 = vadd.f32 0.0, %v1078
        %v1080 = vpop.f32.mrb[0].mxu0
        %1081 = vmatprep.mubr.f32.mxu0 0.0
        %1082 = vmatmul.mubr.f32.gmra.mrb[0].mxu0 %v1004
        %v1083 = vpop.f32.mrb[0].mxu0
        %v1084 = vadd.f32 0.0, %v1083
        %v1085 = vpop.f32.mrb[0].mxu0
        %1086 = vmatprep.mubr.f32.mxu0 0.0
        %1087 = vmatmul.mubr.f32.gmra.mrb[0].mxu0 %v1007
        %v1088 = vpop.f32.mrb[0].mxu0
        %v1089 = vadd.f32 0.0, %v1088
        %v1090 = vpop.f32.mrb[0].mxu0
        %1091 = vmatprep.mubr.f32.mxu0 0.0
        %1092 = vmatmul.mubr.f32.gmra.mrb[0].mxu0 %v1010
        %v1093 = vpop.f32.mrb[0].mxu0
        %v1094 = vadd.f32 0.0, %v1093
        %v1095 = vpop.f32.mrb[0].mxu0
        %1096 = vdwg.mxu0
        %v1098 = vsel %vm791, %v988, 0
        %v1101 = vsel %vm791, %v989, 0
        %v1104 = vsel %vm791, %v990, 0
        %v1107 = vsel %vm791, %v991, 0
        %1109 = vmatprep.subr.mxu0 0.0
        %1110 = vmatpush1.msra.mxu0 %v992
        %1111 = vmatprep.subr.mxu0 0.0
        %1112 = vmatpush1.msra.mxu0 %v993
        %1113 = vmatprep.subr.mxu0 0.0
        %1114 = vmatpush1.msra.mxu0 0.0
        %1115 = vmatprep.subr.mxu0 0.0
        %1116 = vmatpush1.msra.mxu0 0.0
        %1117 = vmatprep.subr.mxu0 0.0
        %1118 = vmatpush1.msra.mxu0 0.0
        %1119 = vmatprep.subr.mxu0 0.0
        %1120 = vmatpush1.msra.mxu0 0.0
        %1121 = vmatprep.subr.mxu0 0.0
        %1122 = vmatpush1.msra.mxu0 0.0
        %1123 = vmatprep.subr.mxu0 0.0
        %1124 = vmatpush1.msra.mxu0 0.0
        %1125 = vmatprep.subr.mxu0 0.0
        %1126 = vmatpush1.msra.mxu0 0.0
        %1127 = vmatprep.subr.mxu0 0.0
        %1128 = vmatpush1.msra.mxu0 0.0
        %1129 = vmatprep.subr.mxu0 0.0
        %1130 = vmatpush1.msra.mxu0 0.0
        %1131 = vmatprep.subr.mxu0 0.0
        %1132 = vmatpush1.msra.mxu0 0.0
        %1133 = vmatprep.subr.mxu0 0.0
        %1134 = vmatpush1.msra.mxu0 0.0
        %1135 = vmatprep.subr.mxu0 0.0
        %1136 = vmatpush1.msra.mxu0 0.0
        %1137 = vmatprep.subr.mxu0 0.0
        %1138 = vmatpush1.msra.mxu0 0.0
        %1139 = vmatprep.subr.mxu0 0.0
        %1140 = vmatpush1.msra.mxu0 0.0
        %1141 = vmatprep.subr.mxu0 0.0
        %1142 = vmatpush1.msra.mxu0 0.0
        %1143 = vmatprep.subr.mxu0 0.0
        %1144 = vmatpush1.msra.mxu0 0.0
        %1145 = vmatprep.subr.mxu0 0.0
        %1146 = vmatpush1.msra.mxu0 0.0
        %1147 = vmatprep.subr.mxu0 0.0
        %1148 = vmatpush1.msra.mxu0 0.0
        %1149 = vmatprep.subr.mxu0 0.0
        %1150 = vmatpush1.msra.mxu0 0.0
        %1151 = vmatprep.subr.mxu0 0.0
        %1152 = vmatpush1.msra.mxu0 0.0
        %1153 = vmatprep.subr.mxu0 0.0
        %1154 = vmatpush1.msra.mxu0 0.0
        %1155 = vmatprep.subr.mxu0 0.0
        %1156 = vmatpush1.msra.mxu0 0.0
        %1157 = vmatprep.subr.mxu0 0.0
        %1158 = vmatpush1.msra.mxu0 0.0
        %1159 = vmatprep.subr.mxu0 0.0
        %1160 = vmatpush1.msra.mxu0 0.0
        %1161 = vmatprep.subr.mxu0 0.0
        %1162 = vmatpush1.msra.mxu0 0.0
        %1163 = vmatprep.subr.mxu0 0.0
        %1164 = vmatpush1.msra.mxu0 0.0
        %1165 = vmatprep.subr.mxu0 0.0
        %1166 = vmatpush1.msra.mxu0 0.0
        %1167 = vmatprep.subr.mxu0 0.0
        %1168 = vmatpush1.msra.mxu0 0.0
        %1169 = vmatprep.subr.mxu0 0.0
        %1170 = vmatpush1.msra.mxu0 0.0
        %1171 = vmatprep.subr.mxu0 0.0
        %1172 = vmatpush1.msra.mxu0 0.0
        %1173 = vmatprep.mubr.f32.mxu0 0.0
        %1174 = vmatmul.mubr.f32.gmra.mrb[0].mxu0 %v1098
        %v1175 = vpop.f32.mrb[0].mxu0
        %v1176 = vadd.f32 %v1079, %v1175
        %v1177 = vpop.f32.mrb[0].mxu0
        %1178 = vmatprep.mubr.f32.mxu0 0.0
        %1179 = vmatmul.mubr.f32.gmra.mrb[0].mxu0 %v1101
        %v1180 = vpop.f32.mrb[0].mxu0
        %v1181 = vadd.f32 %v1084, %v1180
        %v1182 = vpop.f32.mrb[0].mxu0
        %1183 = vmatprep.mubr.f32.mxu0 0.0
        %1184 = vmatmul.mubr.f32.gmra.mrb[0].mxu0 %v1104
        %v1185 = vpop.f32.mrb[0].mxu0
        %v1186 = vadd.f32 %v1089, %v1185
        %v1187 = vpop.f32.mrb[0].mxu0
        %1188 = vmatprep.mubr.f32.mxu0 0.0
        %1189 = vmatmul.mubr.f32.gmra.mrb[0].mxu0 %v1107
        %v1190 = vpop.f32.mrb[0].mxu0
        %v1191 = vadd.f32 %v1094, %v1190
        %v1192 = vpop.f32.mrb[0].mxu0
        %1193 = vdwg.mxu0
        %v1194 = vld [vmem:[#allocation4] sm:$0x1]
        %v1195 = vsel %vm999, %v1176, -inf
        %v1196 = vsel %vm999, %v1181, -inf
        %v1197 = vsel %vm999, %v1186, -inf
        %v1198 = vsel %vm999, %v1191, -inf
        %v1199 = vmax.f32 %v1195, %v1196
        %v1200 = vmax.f32 %v1197, %v1198
        %v1201 = vmax.f32 %v1199, %v1200
        %v1202 = vrot.slane %v1201, 4
        %v1203 = vmax.f32 %v1201, %v1202
        %v1204 = vrot.slane %v1203, 2
        %v1205 = vmax.f32 %v1203, %v1204
        %v1206 = vrot.slane %v1205, 1
        %v1207 = vmax.f32 %v1205, %v1206
        %v1208 = vmax.f32 %v1194, %v1207
        %v1209 = vsub.f32 %v1194, %v1208
        %v1210 = vmul.f32 %v1209, 1.442695
        %v1211 = vpow.pop %v1210
        %v1213 = vlaneseq
        %v1214 = vshrl.u32 %v1213, 7
        %v1215 = vsub.s32 0, %v1214
        %v1216 = vrot.slane %v1208, %v1215
        %v1218 = vsub.f32 %v1176, %v1216
        %v1219 = vsub.f32 %v1181, %v1216
        %v1220 = vsub.f32 %v1186, %v1216
        %v1221 = vsub.f32 %v1191, %v1216
        %v1222 = vmul.f32 %v1218, 1.442695
        %v1223 = vpow.pop %v1222
        %v1224 = vmul.f32 %v1219, 1.442695
        %v1225 = vpow.pop %v1224
        %v1226 = vmul.f32 %v1220, 1.442695
        %v1227 = vpow.pop %v1226
        %v1228 = vmul.f32 %v1221, 1.442695
        %v1229 = vpow.pop %v1228
        %v1230 = vld [vmem:[#allocation15] sm:$0xff]
        %v1232 = vsel %vm999, %v1211, 0
        %1234 = vmatprep.subr.mxu0 0.0
        %1235 = vmatpush1.msra.mxu0 %v1230
        %1236 = vmatprep.subr.mxu0 0.0
        %1237 = vmatpush1.msra.mxu0 0.0
        %1238 = vmatprep.subr.mxu0 0.0
        %1239 = vmatpush1.msra.mxu0 0.0
        %1240 = vmatprep.subr.mxu0 0.0
        %1241 = vmatpush1.msra.mxu0 0.0
        %1242 = vmatprep.subr.mxu0 0.0
        %1243 = vmatpush1.msra.mxu0 0.0
        %1244 = vmatprep.subr.mxu0 0.0
        %1245 = vmatpush1.msra.mxu0 0.0
        %1246 = vmatprep.subr.mxu0 0.0
        %1247 = vmatpush1.msra.mxu0 0.0
        %1248 = vmatprep.subr.mxu0 0.0
        %1249 = vmatpush1.msra.mxu0 0.0
        %1250 = vmatprep.subr.mxu0 0.0
        %1251 = vmatpush1.msra.mxu0 0.0
        %1252 = vmatprep.subr.mxu0 0.0
        %1253 = vmatpush1.msra.mxu0 0.0
        %1254 = vmatprep.subr.mxu0 0.0
        %1255 = vmatpush1.msra.mxu0 0.0
        %1256 = vmatprep.subr.mxu0 0.0
        %1257 = vmatpush1.msra.mxu0 0.0
        %1258 = vmatprep.subr.mxu0 0.0
        %1259 = vmatpush1.msra.mxu0 0.0
        %1260 = vmatprep.subr.mxu0 0.0
        %1261 = vmatpush1.msra.mxu0 0.0
        %1262 = vmatprep.subr.mxu0 0.0
        %1263 = vmatpush1.msra.mxu0 0.0
        %1264 = vmatprep.subr.mxu0 0.0
        %1265 = vmatpush1.msra.mxu0 0.0
        %1266 = vmatprep.subr.mxu0 0.0
        %1267 = vmatpush1.msra.mxu0 0.0
        %1268 = vmatprep.subr.mxu0 0.0
        %1269 = vmatpush1.msra.mxu0 0.0
        %1270 = vmatprep.subr.mxu0 0.0
        %1271 = vmatpush1.msra.mxu0 0.0
        %1272 = vmatprep.subr.mxu0 0.0
        %1273 = vmatpush1.msra.mxu0 0.0
        %1274 = vmatprep.subr.mxu0 0.0
        %1275 = vmatpush1.msra.mxu0 0.0
        %1276 = vmatprep.subr.mxu0 0.0
        %1277 = vmatpush1.msra.mxu0 0.0
        %1278 = vmatprep.subr.mxu0 0.0
        %1279 = vmatpush1.msra.mxu0 0.0
        %1280 = vmatprep.subr.mxu0 0.0
        %1281 = vmatpush1.msra.mxu0 0.0
        %1282 = vmatprep.subr.mxu0 0.0
        %1283 = vmatpush1.msra.mxu0 0.0
        %1284 = vmatprep.subr.mxu0 0.0
        %1285 = vmatpush1.msra.mxu0 0.0
        %1286 = vmatprep.subr.mxu0 0.0
        %1287 = vmatpush1.msra.mxu0 0.0
        %1288 = vmatprep.subr.mxu0 0.0
        %1289 = vmatpush1.msra.mxu0 0.0
        %1290 = vmatprep.subr.mxu0 0.0
        %1291 = vmatpush1.msra.mxu0 0.0
        %1292 = vmatprep.subr.mxu0 0.0
        %1293 = vmatpush1.msra.mxu0 0.0
        %1294 = vmatprep.subr.mxu0 0.0
        %1295 = vmatpush1.msra.mxu0 0.0
        %1296 = vmatprep.subr.mxu0 0.0
        %1297 = vmatpush1.msra.mxu0 0.0
        %1298 = vmatprep.mubr.f32.mxu0 0.0
        %1299 = vmatmul.mubr.f32.gmra.mrb[0].mxu0 %v1232
        %v1300 = vpop.f32.mrb[0].mxu0
        %v1301 = vadd.f32 0.0, %v1300
        %v1302 = vpop.f32.mrb[0].mxu0
        %1303 = vdwg.mxu0
        %v1305 = vsel %vm999, %v1223, 0
        %v1308 = vsel %vm999, %v1225, 0
        %v1311 = vsel %vm999, %v1227, 0
        %v1314 = vsel %vm999, %v1229, 0
        %1316 = vmatprep.subr.mxu0 0.0
        %1317 = vmatpush1.msra.mxu0 %v1230
        %1318 = vmatprep.subr.mxu0 0.0
        %1319 = vmatpush1.msra.mxu0 0.0
        %1320 = vmatprep.subr.mxu0 0.0
        %1321 = vmatpush1.msra.mxu0 0.0
        %1322 = vmatprep.subr.mxu0 0.0
        %1323 = vmatpush1.msra.mxu0 0.0
        %1324 = vmatprep.subr.mxu0 0.0
        %1325 = vmatpush1.msra.mxu0 0.0
        %1326 = vmatprep.subr.mxu0 0.0
        %1327 = vmatpush1.msra.mxu0 0.0
        %1328 = vmatprep.subr.mxu0 0.0
        %1329 = vmatpush1.msra.mxu0 0.0
        %1330 = vmatprep.subr.mxu0 0.0
        %1331 = vmatpush1.msra.mxu0 0.0
        %1332 = vmatprep.subr.mxu0 0.0
        %1333 = vmatpush1.msra.mxu0 0.0
        %1334 = vmatprep.subr.mxu0 0.0
        %1335 = vmatpush1.msra.mxu0 0.0
        %1336 = vmatprep.subr.mxu0 0.0
        %1337 = vmatpush1.msra.mxu0 0.0
        %1338 = vmatprep.subr.mxu0 0.0
        %1339 = vmatpush1.msra.mxu0 0.0
        %1340 = vmatprep.subr.mxu0 0.0
        %1341 = vmatpush1.msra.mxu0 0.0
        %1342 = vmatprep.subr.mxu0 0.0
        %1343 = vmatpush1.msra.mxu0 0.0
        %1344 = vmatprep.subr.mxu0 0.0
        %1345 = vmatpush1.msra.mxu0 0.0
        %1346 = vmatprep.subr.mxu0 0.0
        %1347 = vmatpush1.msra.mxu0 0.0
        %1348 = vmatprep.subr.mxu0 0.0
        %1349 = vmatpush1.msra.mxu0 0.0
        %1350 = vmatprep.subr.mxu0 0.0
        %1351 = vmatpush1.msra.mxu0 0.0
        %1352 = vmatprep.subr.mxu0 0.0
        %1353 = vmatpush1.msra.mxu0 0.0
        %1354 = vmatprep.subr.mxu0 0.0
        %1355 = vmatpush1.msra.mxu0 0.0
        %1356 = vmatprep.subr.mxu0 0.0
        %1357 = vmatpush1.msra.mxu0 0.0
        %1358 = vmatprep.subr.mxu0 0.0
        %1359 = vmatpush1.msra.mxu0 0.0
        %1360 = vmatprep.subr.mxu0 0.0
        %1361 = vmatpush1.msra.mxu0 0.0
        %1362 = vmatprep.subr.mxu0 0.0
        %1363 = vmatpush1.msra.mxu0 0.0
        %1364 = vmatprep.subr.mxu0 0.0
        %1365 = vmatpush1.msra.mxu0 0.0
        %1366 = vmatprep.subr.mxu0 0.0
        %1367 = vmatpush1.msra.mxu0 0.0
        %1368 = vmatprep.subr.mxu0 0.0
        %1369 = vmatpush1.msra.mxu0 0.0
        %1370 = vmatprep.subr.mxu0 0.0
        %1371 = vmatpush1.msra.mxu0 0.0
        %1372 = vmatprep.subr.mxu0 0.0
        %1373 = vmatpush1.msra.mxu0 0.0
        %1374 = vmatprep.subr.mxu0 0.0
        %1375 = vmatpush1.msra.mxu0 0.0
        %1376 = vmatprep.subr.mxu0 0.0
        %1377 = vmatpush1.msra.mxu0 0.0
        %1378 = vmatprep.subr.mxu0 0.0
        %1379 = vmatpush1.msra.mxu0 0.0
        %1380 = vmatprep.mubr.f32.mxu0 0.0
        %1381 = vmatmul.mubr.f32.gmra.mrb[0].mxu0 %v1305
        %v1382 = vpop.f32.mrb[0].mxu0
        %v1383 = vadd.f32 0.0, %v1382
        %v1384 = vpop.f32.mrb[0].mxu0
        %1385 = vmatprep.mubr.f32.mxu0 0.0
        %1386 = vmatmul.mubr.f32.gmra.mrb[0].mxu0 %v1308
        %v1387 = vpop.f32.mrb[0].mxu0
        %v1388 = vadd.f32 0.0, %v1387
        %v1389 = vpop.f32.mrb[0].mxu0
        %1390 = vmatprep.mubr.f32.mxu0 0.0
        %1391 = vmatmul.mubr.f32.gmra.mrb[0].mxu0 %v1311
        %v1392 = vpop.f32.mrb[0].mxu0
        %v1393 = vadd.f32 0.0, %v1392
        %v1394 = vpop.f32.mrb[0].mxu0
        %1395 = vmatprep.mubr.f32.mxu0 0.0
        %1396 = vmatmul.mubr.f32.gmra.mrb[0].mxu0 %v1314
        %v1397 = vpop.f32.mrb[0].mxu0
        %v1398 = vadd.f32 0.0, %v1397
        %v1399 = vpop.f32.mrb[0].mxu0
        %1400 = vdwg.mxu0
        %v1401 = vld [vmem:[#allocation5] sm:$0xff]
        %v1402 = vld [vmem:[#allocation5 + $0x8] sm:$0xff]
        %v1403 = vlaneseq
        %v1404 = vshrl.u32 %v1403, 7
        %v1405 = vsub.s32 0, %v1404
        %v1406 = vrot.slane %v1301, %v1405
        %v1407 = vmul.f32 %v1401, %v1406
        %v1408 = vmul.f32 %v1402, %v1406
        %1413 = vrot.lane.b32.xlu0 %v970, 112
        %v1414 = vpop.permute.xlu0 %1413
        %1415 = vrot.lane.b32.xlu0 %v975, 112
        %v1416 = vpop.permute.xlu0 %1415
        %1417 = vrot.lane.b32.xlu0 %v980, 112
        %v1418 = vpop.permute.xlu0 %1417
        %1419 = vrot.lane.b32.xlu0 %v985, 112
        %v1420 = vpop.permute.xlu0 %1419
        %v1425 = vmul.f32 %v1383, %v1414
        %v1426 = vmul.f32 %v1388, %v1416
        %v1427 = vmul.f32 %v1393, %v1418
        %v1428 = vmul.f32 %v1398, %v1420
        %1429 = vxpose.xlu0.b32.start [1/16] %v785, 128
        %1430 = vxpose.xlu0.b32.cont [2/16] %v786, 128
        %1431 = vxpose.xlu0.b32.cont [3/16] %v787, 128
        %1432 = vxpose.xlu0.b32.cont [4/16] %v788, 128
        %1433 = vxpose.xlu0.b32.cont [5/16] 0.0, 128
        %1434 = vxpose.xlu0.b32.cont [6/16] 0.0, 128
        %1435 = vxpose.xlu0.b32.cont [7/16] 0.0, 128
        %1436 = vxpose.xlu0.b32.cont [8/16] 0.0, 128
        %1437 = vxpose.xlu0.b32.cont [9/16] 0.0, 128
        %1438 = vxpose.xlu0.b32.cont [10/16] 0.0, 128
        %1439 = vxpose.xlu0.b32.cont [11/16] 0.0, 128
        %1440 = vxpose.xlu0.b32.cont [12/16] 0.0, 128
        %1441 = vxpose.xlu0.b32.cont [13/16] 0.0, 128
        %1442 = vxpose.xlu0.b32.cont [14/16] 0.0, 128
        %1443 = vxpose.xlu0.b32.cont [15/16] 0.0, 128
        %1444 = vxpose.xlu0.b32.end [16/16] 0.0, 128
        %v1445 = vpop.trf.xlu0
        %v1446 = vpop.trf.xlu0
        %v1447 = vpop.trf.xlu0
        %v1448 = vpop.trf.xlu0
        %v1449 = vpop.trf.xlu0
        %v1450 = vpop.trf.xlu0
        %v1451 = vpop.trf.xlu0
        %v1452 = vpop.trf.xlu0
        %v1453 = vpop.trf.xlu0
        %v1454 = vpop.trf.xlu0
        %v1455 = vpop.trf.xlu0
        %v1456 = vpop.trf.xlu0
        %v1457 = vpop.trf.xlu0
        %v1458 = vpop.trf.xlu0
        %v1459 = vpop.trf.xlu0
        %v1460 = vpop.trf.xlu0
        %vm1461 = vcmask 261120
        %v1463 = vsel %vm1461, %v1445, 0
        %v1466 = vsel %vm1461, %v1446, 0
        %1468 = vmatprep.subr.mxu0 0.0
        %1469 = vmatpush1.msra.mxu0 %v1425
        %1470 = vmatprep.subr.mxu0 0.0
        %1471 = vmatpush1.msra.mxu0 %v1426
        %1472 = vmatprep.subr.mxu0 0.0
        %1473 = vmatpush1.msra.mxu0 %v1427
        %1474 = vmatprep.subr.mxu0 0.0
        %1475 = vmatpush1.msra.mxu0 %v1428
        %1476 = vmatprep.subr.mxu0 0.0
        %1477 = vmatpush1.msra.mxu0 0.0
        %1478 = vmatprep.subr.mxu0 0.0
        %1479 = vmatpush1.msra.mxu0 0.0
        %1480 = vmatprep.subr.mxu0 0.0
        %1481 = vmatpush1.msra.mxu0 0.0
        %1482 = vmatprep.subr.mxu0 0.0
        %1483 = vmatpush1.msra.mxu0 0.0
        %1484 = vmatprep.subr.mxu0 0.0
        %1485 = vmatpush1.msra.mxu0 0.0
        %1486 = vmatprep.subr.mxu0 0.0
        %1487 = vmatpush1.msra.mxu0 0.0
        %1488 = vmatprep.subr.mxu0 0.0
        %1489 = vmatpush1.msra.mxu0 0.0
        %1490 = vmatprep.subr.mxu0 0.0
        %1491 = vmatpush1.msra.mxu0 0.0
        %1492 = vmatprep.subr.mxu0 0.0
        %1493 = vmatpush1.msra.mxu0 0.0
        %1494 = vmatprep.subr.mxu0 0.0
        %1495 = vmatpush1.msra.mxu0 0.0
        %1496 = vmatprep.subr.mxu0 0.0
        %1497 = vmatpush1.msra.mxu0 0.0
        %1498 = vmatprep.subr.mxu0 0.0
        %1499 = vmatpush1.msra.mxu0 0.0
        %1500 = vmatprep.subr.mxu0 0.0
        %1501 = vmatpush1.msra.mxu0 0.0
        %1502 = vmatprep.subr.mxu0 0.0
        %1503 = vmatpush1.msra.mxu0 0.0
        %1504 = vmatprep.subr.mxu0 0.0
        %1505 = vmatpush1.msra.mxu0 0.0
        %1506 = vmatprep.subr.mxu0 0.0
        %1507 = vmatpush1.msra.mxu0 0.0
        %1508 = vmatprep.subr.mxu0 0.0
        %1509 = vmatpush1.msra.mxu0 0.0
        %1510 = vmatprep.subr.mxu0 0.0
        %1511 = vmatpush1.msra.mxu0 0.0
        %1512 = vmatprep.subr.mxu0 0.0
        %1513 = vmatpush1.msra.mxu0 0.0
        %1514 = vmatprep.subr.mxu0 0.0
        %1515 = vmatpush1.msra.mxu0 0.0
        %1516 = vmatprep.subr.mxu0 0.0
        %1517 = vmatpush1.msra.mxu0 0.0
        %1518 = vmatprep.subr.mxu0 0.0
        %1519 = vmatpush1.msra.mxu0 0.0
        %1520 = vmatprep.subr.mxu0 0.0
        %1521 = vmatpush1.msra.mxu0 0.0
        %1522 = vmatprep.subr.mxu0 0.0
        %1523 = vmatpush1.msra.mxu0 0.0
        %1524 = vmatprep.subr.mxu0 0.0
        %1525 = vmatpush1.msra.mxu0 0.0
        %1526 = vmatprep.subr.mxu0 0.0
        %1527 = vmatpush1.msra.mxu0 0.0
        %1528 = vmatprep.subr.mxu0 0.0
        %1529 = vmatpush1.msra.mxu0 0.0
        %1530 = vmatprep.subr.mxu0 0.0
        %1531 = vmatpush1.msra.mxu0 0.0
        %1532 = vmatprep.mubr.f32.mxu0 0.0
        %1533 = vmatmul.mubr.f32.gmra.mrb[0].mxu0 %v1463
        %v1534 = vpop.f32.mrb[0].mxu0
        %v1535 = vadd.f32 0.0, %v1534
        %v1536 = vpop.f32.mrb[0].mxu0
        %1537 = vmatprep.mubr.f32.mxu0 0.0
        %1538 = vmatmul.mubr.f32.gmra.mrb[0].mxu0 %v1466
        %v1539 = vpop.f32.mrb[0].mxu0
        %v1540 = vadd.f32 0.0, %v1539
        %v1541 = vpop.f32.mrb[0].mxu0
        %1542 = vdwg.mxu0
        %v1543 = vadd.f32 %v1407, %v1535
        %v1544 = vadd.f32 %v1408, %v1540
        %vm1545 = vcmask 195584
        %1546 = vst.msk [vmem:[#allocation5] sm:$0xff] %vm1545, %v1543
        %1547 = vst.msk [vmem:[#allocation5 + $0x8] sm:$0xff] %vm1545, %v1544
        %vm1548 = vcmask 57344
        %1549 = vst.msk [vmem:[#allocation4] sm:$0x1] %vm1548, %v1208
        %p1550 = scmp.eq.s32.totalorder %s32, 1
        // Predicated region
        $region105: #{tpu_custom_call.1} parent=59 // pred_check
          %p1551 = pneg %p1550
        $region106: #{tpu_custom_call.1} parent=59 // pred_check_branch
          %1553 = sbr.rel (%p1551) target = $region108
        $region107: #{tpu_custom_call.1} parent=59 // pred_region
          %v1554 = vld [vmem:[#allocation5] sm:$0xff]
          %v1555 = vld [vmem:[#allocation5 + $0x8] sm:$0xff]
          %v1556 = vld [vmem:[#allocation17] sm:$0xff]
          %v1558 = vsel %vm999, %v1554, 0
          %v1561 = vsel %vm999, %v1555, 0
          %1563 = vmatprep.subr.mxu0 0.0
          %1564 = vmatpush1.msra.mxu0 %v1556
          %1565 = vmatprep.subr.mxu0 0.0
          %1566 = vmatpush1.msra.mxu0 0.0
          %1567 = vmatprep.subr.mxu0 0.0
          %1568 = vmatpush1.msra.mxu0 0.0
          %1569 = vmatprep.subr.mxu0 0.0
          %1570 = vmatpush1.msra.mxu0 0.0
          %1571 = vmatprep.subr.mxu0 0.0
          %1572 = vmatpush1.msra.mxu0 0.0
          %1573 = vmatprep.subr.mxu0 0.0
          %1574 = vmatpush1.msra.mxu0 0.0
          %1575 = vmatprep.subr.mxu0 0.0
          %1576 = vmatpush1.msra.mxu0 0.0
          %1577 = vmatprep.subr.mxu0 0.0
          %1578 = vmatpush1.msra.mxu0 0.0
          %1579 = vmatprep.subr.mxu0 0.0
          %1580 = vmatpush1.msra.mxu0 0.0
          %1581 = vmatprep.subr.mxu0 0.0
          %1582 = vmatpush1.msra.mxu0 0.0
          %1583 = vmatprep.subr.mxu0 0.0
          %1584 = vmatpush1.msra.mxu0 0.0
          %1585 = vmatprep.subr.mxu0 0.0
          %1586 = vmatpush1.msra.mxu0 0.0
          %1587 = vmatprep.subr.mxu0 0.0
          %1588 = vmatpush1.msra.mxu0 0.0
          %1589 = vmatprep.subr.mxu0 0.0
          %1590 = vmatpush1.msra.mxu0 0.0
          %1591 = vmatprep.subr.mxu0 0.0
          %1592 = vmatpush1.msra.mxu0 0.0
          %1593 = vmatprep.subr.mxu0 0.0
          %1594 = vmatpush1.msra.mxu0 0.0
          %1595 = vmatprep.subr.mxu0 0.0
          %1596 = vmatpush1.msra.mxu0 0.0
          %1597 = vmatprep.subr.mxu0 0.0
          %1598 = vmatpush1.msra.mxu0 0.0
          %1599 = vmatprep.subr.mxu0 0.0
          %1600 = vmatpush1.msra.mxu0 0.0
          %1601 = vmatprep.subr.mxu0 0.0
          %1602 = vmatpush1.msra.mxu0 0.0
          %1603 = vmatprep.subr.mxu0 0.0
          %1604 = vmatpush1.msra.mxu0 0.0
          %1605 = vmatprep.subr.mxu0 0.0
          %1606 = vmatpush1.msra.mxu0 0.0
          %1607 = vmatprep.subr.mxu0 0.0
          %1608 = vmatpush1.msra.mxu0 0.0
          %1609 = vmatprep.subr.mxu0 0.0
          %1610 = vmatpush1.msra.mxu0 0.0
          %1611 = vmatprep.subr.mxu0 0.0
          %1612 = vmatpush1.msra.mxu0 0.0
          %1613 = vmatprep.subr.mxu0 0.0
          %1614 = vmatpush1.msra.mxu0 0.0
          %1615 = vmatprep.subr.mxu0 0.0
          %1616 = vmatpush1.msra.mxu0 0.0
          %1617 = vmatprep.subr.mxu0 0.0
          %1618 = vmatpush1.msra.mxu0 0.0
          %1619 = vmatprep.subr.mxu0 0.0
          %1620 = vmatpush1.msra.mxu0 0.0
          %1621 = vmatprep.subr.mxu0 0.0
          %1622 = vmatpush1.msra.mxu0 0.0
          %1623 = vmatprep.subr.mxu0 0.0
          %1624 = vmatpush1.msra.mxu0 0.0
          %1625 = vmatprep.subr.mxu0 0.0
          %1626 = vmatpush1.msra.mxu0 0.0
          %1627 = vmatprep.mubr.f32.mxu0 0.0
          %1628 = vmatmul.mubr.f32.gmra.mrb[0].mxu0 %v1558
          %v1629 = vpop.f32.mrb[0].mxu0
          %v1630 = vadd.f32 1e-16, %v1629
          %v1631 = vpop.f32.mrb[0].mxu0
          %1632 = vmatprep.mubr.f32.mxu0 0.0
          %1633 = vmatmul.mubr.f32.gmra.mrb[0].mxu0 %v1561
          %v1634 = vpop.f32.mrb[0].mxu0
          %v1635 = vadd.f32 1e-16, %v1634
          %v1636 = vpop.f32.mrb[0].mxu0
          %1637 = vdwg.mxu0
          %1640 = vrot.lane.b32.xlu0 %v1630, 8
          %v1641 = vpop.permute.xlu0 %1640
          %1642 = vrot.lane.b32.xlu0 %v1635, 8
          %v1643 = vpop.permute.xlu0 %1642
          %v1646 = vrcp.pop %v1641
          %v1647 = vmul.f32 %v1554, %v1646
          %v1648 = vrcp.pop %v1643
          %v1649 = vmul.f32 %v1555, %v1648
          %1652 = vrot.lane.b32.xlu0 %v1647, 120
          %v1653 = vpop.permute.xlu0 %1652
          %1654 = vrot.lane.b32.xlu0 %v1649, 120
          %v1655 = vpop.permute.xlu0 %1654
          %1658 = vst.msk [vmem:[#allocation23] sm:$0xff] %vm791, %v1653
          %1659 = vst.msk [vmem:[#allocation23 + $0x8] sm:$0xff] %vm791, %v1655
        $region108: #{tpu_custom_call.1} parent=59 // pred_fallthru
          _
        // Predicated region
        $region109: #{tpu_custom_call.1} parent=59 // pred_check
          %p1660 = pneg %p270
        $region110: #{tpu_custom_call.1} parent=59 // pred_check_branch
          %1662 = sbr.rel (%p1660) target = $region112
        $region111: #{tpu_custom_call.1} parent=59 // pred_region
          %s1664 = ssub.s32 256, 256
          %1665 = vsyncadd [#allocation8], %s1664
          %s1666 = sshll.u32 [#allocation23], 4
          %s1667 = int_to_ptr.vmem [resolvable:$true] %s1666
          %1672 = dma.vmem_to_hbm [thread:$0]  %s1667, 256, %s10, [#allocation8], 128, 128, 8
        $region112: #{tpu_custom_call.1} parent=59 // pred_fallthru
          _
        // Predicated region
        $region113: #{tpu_custom_call.1} parent=59 // pred_check
          %p1673 = pneg %p270
        $region114: #{tpu_custom_call.1} parent=59 // pred_check_branch
          %1675 = sbr.rel (%p1673) target = $region116
        $region115: #{tpu_custom_call.1} parent=59 // pred_region
          %1676 = dma.done [#allocation8], 256
        $region116: #{tpu_custom_call.1} parent=59 // pred_fallthru
          _
      $region60: #{tpu_custom_call.1} parent=5 // pred_fallthru
        _
      %p1677 = scmp.le.s32.totalorder 2, %s27
      // Predicated region
      $region117: #{tpu_custom_call.1} parent=5 // pred_check
        %p1678 = pneg %p1677
      $region118: #{tpu_custom_call.1} parent=5 // pred_check_branch
        %1680 = sbr.rel (%p1678) target = $region120
      $region119: #{tpu_custom_call.1} parent=5 // pred_region
        %s1681 = ssub.s32 %s27, 2
      $region120: #{tpu_custom_call.1} parent=5 // pred_fallthru
        _
    $region6: #{tpu_custom_call.1} parent=1 // loop_footer
      %s31 = sadd.s32 1, %s27
    $region7: #{tpu_custom_call.1} parent=1 // loop_footer_branch
      %26 = sbr.rel target = $region3
    $region8: #{tpu_custom_call.1} parent=1 // loop_exit
      _
    %1682 = vsyncpa [#allocation7], 1
    %s1683 = scalar_lea.sflag [#allocation7], 1
    %1684 = vsyncpa %s1683, 1
    %1685 = vsyncpa [#allocation10], 1
    %1686 = vsyncpa [#allocation13], 1
    %1687 = vsyncpa [#allocation16], 1
    %1688 = vsyncpa [#allocation19], 1
    %s1689 = scalar_lea.sflag [#allocation19], 1
    %1690 = vsyncpa %s1689, 1
    %1691 = vsyncpa [#allocation22], 1
    %s1692 = scalar_lea.sflag [#allocation22], 1
    %1693 = vsyncpa %s1692, 1
    %1694 = vsyncpa [#allocation8], 1
    %s1695 = scalar_lea.sflag [#allocation8], 1
    %1696 = vsyncpa %s1695, 1

</llo_original>
